<compile_context>
chip_gen: v7x
topology: tpu7x:2x2x1
jax: 0.10.0
libtpu: 0.0.40
codegen_flags: <defaults>
</compile_context>

<pallas_src>
import jax
import jax.numpy as jnp
from jax.experimental import pallas as pl
from jax.experimental.pallas import tpu as pltpu

NPAD = 128   # padded node count   (lane/sublane friendly)
FPAD = 128   # padded feature width (lane-dense outputs)

BF = jnp.bfloat16
F32 = jnp.float32


# ---------------- fused Pallas kernel (hot path) ----------------

def _fused_forward_kernel(h_ref, a_ref, w256_ref, w128_ref, b_ref, mask_ref,
                          x_out_ref, y_out_ref):
    # NOTE: refs are indexed at each use (no hoisted long-lived vreg copies of
    # A / shared weights); vld slots are far from saturated so re-loads are free.

    def gs_layer(x_bf, wi, mi):
        # x_bf: (NPAD, FPAD) bf16
        # one wide matmul: x @ [Wl | Wax]  -> (NPAD, 2*FPAD) f32
        combo = jnp.dot(x_bf, w256_ref[wi], preferred_element_type=F32)
        # message path: lin(x_j) + bias; per-edge reweight is folded into A
        hmsg = combo[:, :FPAD] + b_ref[2 * wi:2 * wi + 1, :]
        # aggregate: scatter-mean over edges == A_scaled @ hmsg
        aggr = jnp.dot(a_ref[...], hmsg.astype(BF), preferred_element_type=F32)
        # update: relu(agg_lin(cat(aggr, x))) with the concat split into two
        # matmuls; the x-path (combo[:, FPAD:]) was computed in the wide matmul.
        z = (jnp.dot(aggr.astype(BF), w128_ref[wi], preferred_element_type=F32)
             + combo[:, FPAD:] + b_ref[2 * wi + 1:2 * wi + 2, :])
        z = jnp.maximum(z, 0.0)            # relu in update; outer F.relu is idempotent
        return z * mask_ref[mi]            # inverted dropout (pre-scaled host mask)

    # layer 0: prop_input
    x = gs_layer(h_ref[...], 0, 0)
    # layers 1, 2: prop_hidden (shared weights, same ref slot)
    x = gs_layer(x.astype(BF), 1, 1)
    x = gs_layer(x.astype(BF), 1, 2)
    x_out_ref[...] = x                     # post-relu, post-dropout embedding (matches torch)

    # classifier: Linear -> relu -> Linear  (cls_layers=2, bn=False)
    hc = jnp.maximum(
        jnp.dot(x.astype(BF), w128_ref[2], preferred_element_type=F32)
        + b_ref[4:5, :], 0.0)
    y_out_ref[...] = (jnp.dot(hc.astype(BF), w128_ref[3], preferred_element_type=F32)
                      + b_ref[5:6, :])


# ---------------- wrapper ----------------

def reweight_gnn_forward(h_pad, a_pad, w256, w128, biases, masks, *,
                         n_nodes, gnn_dim, output_dim):
    x_full, y_full = pl.pallas_call(
        _fused_forward_kernel,
        out_shape=(jax.ShapeDtypeStruct((NPAD, FPAD), jnp.float32),
                   jax.ShapeDtypeStruct((NPAD, FPAD), jnp.float32)),
        grid_spec=pltpu.PrefetchScalarGridSpec(
            num_scalar_prefetch=0,
            grid=(1,),
            in_specs=[
                pl.BlockSpec((NPAD, FPAD), lambda i: (0, 0)),           # h (bf16)
                pl.BlockSpec((NPAD, NPAD), lambda i: (0, 0)),           # A_scaled (bf16)
                pl.BlockSpec((2, FPAD, 2 * FPAD), lambda i: (0, 0, 0)), # [Wl|Wax] x2 (bf16)
                pl.BlockSpec((4, FPAD, FPAD), lambda i: (0, 0, 0)),     # Waa0,Waa1,Wc1,Wc2 (bf16)
                pl.BlockSpec((8, FPAD), lambda i: (0, 0)),              # biases (f32)
                pl.BlockSpec((3, NPAD, FPAD), lambda i: (0, 0, 0)),     # dropout masks (f32)
            ],
            out_specs=[pl.BlockSpec((NPAD, FPAD), lambda i: (0, 0)),
                       pl.BlockSpec((NPAD, FPAD), lambda i: (0, 0))],
        ),
        compiler_params=pltpu.CompilerParams(
            dimension_semantics=("arbitrary",)),
    )(h_pad, a_pad, w256, w128, biases, masks)

    return x_full[:n_nodes, :gnn_dim], y_full[:n_nodes, :output_dim]


# ---------------- parameter / input construction (glue) ----------------

def linear_params(key, fan_in, fan_out):
    # deterministic nn.Linear-style init: U(-1/sqrt(fan_in), 1/sqrt(fan_in))
    k1, k2 = jax.random.split(key)
    bound = 1.0 / float(fan_in) ** 0.5
    W = jax.random.uniform(k1, (fan_in, fan_out), jnp.float32, -bound, bound)
    b = jax.random.uniform(k2, (1, fan_out), jnp.float32, -bound, bound)
    return W, b


def pad2(a, rows, cols):
    out = jnp.zeros((rows, cols), a.dtype)
    return out.at[:a.shape[0], :a.shape[1]].set(a)


if __name__ == "__main__":
    key = jax.random.PRNGKey(0)
    keys = jax.random.split(key, 12)

    # module hyperparameters (small shapes)
    N, E = 64, 256
    input_dim, gnn_dim, cls_dim, output_dim = 32, 32, 16, 4
    dropout_p = 0.5
    lmda = 1.0  # rw_lmda

    # inputs: node features h, edge_index (src, dst), edge_weight
    h = jax.random.normal(keys[0], (N, input_dim), jnp.float32)
    src = jax.random.randint(keys[1], (E,), 0, N)   # edge_index[0] (aggregation idx)
    dst = jax.random.randint(keys[2], (E,), 0, N)   # edge_index[1] (x_j source)
    edge_weight = jax.random.uniform(keys[3], (E,), jnp.float32)

    # graph preprocessing (glue): dense reweighted aggregation matrix with
    # mean normalization pre-folded (inv_deg * A); zero-degree rows stay zero.
    alpha = (1.0 - lmda) + lmda * edge_weight
    A = jnp.zeros((N, N), jnp.float32).at[src, dst].add(alpha)
    deg = jnp.zeros((N,), jnp.float32).at[src].add(1.0)
    inv_deg = 1.0 / jnp.maximum(deg, 1.0)
    A_scaled = inv_deg[:, None] * A

    # prop_input: GS_reweight(input_dim, gnn_dim, 'mean')
    Wl0, bl0 = linear_params(keys[4], input_dim, gnn_dim)
    Wa0, ba0 = linear_params(keys[5], gnn_dim + input_dim, gnn_dim)
    Wa0_aggr, Wa0_x = Wa0[:gnn_dim], Wa0[gnn_dim:]
    # prop_hidden: GS_reweight(gnn_dim, gnn_dim, 'mean') -- shared by layers 1 and 2
    Wl1, bl1 = linear_params(keys[6], gnn_dim, gnn_dim)
    Wa1, ba1 = linear_params(keys[7], gnn_dim + gnn_dim, gnn_dim)
    Wa1_aggr, Wa1_x = Wa1[:gnn_dim], Wa1[gnn_dim:]
    # mlp_classify: Linear(gnn_dim, cls_dim), Linear(cls_dim, output_dim)
    Wc1, bc1 = linear_params(keys[8], gnn_dim, cls_dim)
    Wc2, bc2 = linear_params(keys[9], cls_dim, output_dim)

    # pack / pad everything to lane-dense widths; bf16 for all MXU operands.
    h_pad = pad2(h, NPAD, FPAD).astype(BF)
    a_pad = pad2(A_scaled, NPAD, NPAD).astype(BF)

    # fused [Wl | Wax] (128, 256) per GS layer -> one wide matmul per layer
    wcomb0 = jnp.concatenate([pad2(Wl0, FPAD, FPAD), pad2(Wa0_x, FPAD, FPAD)], axis=1)
    wcomb1 = jnp.concatenate([pad2(Wl1, FPAD, FPAD), pad2(Wa1_x, FPAD, FPAD)], axis=1)
    w256 = jnp.stack([wcomb0, wcomb1]).astype(BF)                      # (2, 128, 256)

    w128 = jnp.stack([pad2(Wa0_aggr, FPAD, FPAD), pad2(Wa1_aggr, FPAD, FPAD),
                      pad2(Wc1, FPAD, FPAD), pad2(Wc2, FPAD, FPAD)]).astype(BF)  # (4,128,128)

    brows = [pad2(b, 1, FPAD) for b in (bl0, ba0, bl1, ba1, bc1, bc2)]
    biases = pad2(jnp.concatenate(brows, axis=0), 8, FPAD)             # (8, 128) f32

    # host-side inverted-dropout masks (F.dropout(training=True) semantics);
    # one Bernoulli(keep) mask per GNN layer, pre-scaled by 1/keep.
    keep = 1.0 - dropout_p
    if keep > 0.0:
        bern = jax.random.bernoulli(keys[10], keep, (3, NPAD, FPAD))
        masks = bern.astype(jnp.float32) * (1.0 / keep)
    else:
        masks = jnp.zeros((3, NPAD, FPAD), jnp.float32)

    x_out, y_out = reweight_gnn_forward(
        h_pad, a_pad, w256, w128, biases, masks,
        n_nodes=N, gnn_dim=gnn_dim, output_dim=output_dim)
    jax.block_until_ready((x_out, y_out))

    assert x_out.shape == (N, gnn_dim) and y_out.shape == (N, output_dim)
    assert bool(jnp.all(jnp.isfinite(x_out))) and bool(jnp.all(jnp.isfinite(y_out)))
    print("KERNEL_OK")
</pallas_src>

<mosaic_0001>
module attributes {stable_mosaic.version = 11 : i64} {
  func.func @_fused_forward_kernel(%arg0: i32, %arg1: memref<128x128xbf16, #tpu.memory_space<vmem>>, %arg2: memref<128x128xbf16, #tpu.memory_space<vmem>>, %arg3: memref<2x128x256xbf16, #tpu.memory_space<vmem>>, %arg4: memref<4x128x128xbf16, #tpu.memory_space<vmem>>, %arg5: memref<8x128xf32, #tpu.memory_space<vmem>>, %arg6: memref<3x128x128xf32, #tpu.memory_space<vmem>>, %arg7: memref<128x128xf32, #tpu.memory_space<vmem>>, %arg8: memref<128x128xf32, #tpu.memory_space<vmem>>) attributes {dimension_semantics = [#tpu.dimension_semantics<arbitrary>], iteration_bounds = array<i64: 1>, scalar_prefetch = 0 : i64, scratch_operands = 0 : i64, tpu.core_type = #tpu.core_type<tc>, window_params = [{pipeline_mode = #tpu.pipeline_mode<synchronous>, transform_indices = @transform_0, window_bounds = array<i64: 128, 128>}, {pipeline_mode = #tpu.pipeline_mode<synchronous>, transform_indices = @transform_1, window_bounds = array<i64: 128, 128>}, {pipeline_mode = #tpu.pipeline_mode<synchronous>, transform_indices = @transform_2, window_bounds = array<i64: 2, 128, 256>}, {pipeline_mode = #tpu.pipeline_mode<synchronous>, transform_indices = @transform_3, window_bounds = array<i64: 4, 128, 128>}, {pipeline_mode = #tpu.pipeline_mode<synchronous>, transform_indices = @transform_4, window_bounds = array<i64: 8, 128>}, {pipeline_mode = #tpu.pipeline_mode<synchronous>, transform_indices = @transform_5, window_bounds = array<i64: 3, 128, 128>}, {pipeline_mode = #tpu.pipeline_mode<synchronous>, transform_indices = @transform_6, window_bounds = array<i64: 128, 128>}, {pipeline_mode = #tpu.pipeline_mode<synchronous>, transform_indices = @transform_7, window_bounds = array<i64: 128, 128>}]} {
    %c0 = arith.constant 0 : index
    %c0_0 = arith.constant 0 : index
    %0 = vector.load %arg1[%c0, %c0_0] : memref<128x128xbf16, #tpu.memory_space<vmem>>, vector<128x128xbf16>
    %c0_1 = arith.constant 0 : index
    %c0_2 = arith.constant 0 : index
    %c0_3 = arith.constant 0 : index
    %1 = vector.load %arg3[%c0_1, %c0_2, %c0_3] : memref<2x128x256xbf16, #tpu.memory_space<vmem>>, vector<1x128x256xbf16>
    %2 = vector.shape_cast %1 : vector<1x128x256xbf16> to vector<128x256xbf16>
    %cst = arith.constant dense<0.000000e+00> : vector<128x256xf32>
    %3 = tpu.matmul %0, %2, %cst {dimension_numbers = #tpu.dot_dimension_numbers<[1], [0], [0], [1], [0, 0, 1, 1], [], []>} : vector<128x128xbf16>, vector<128x256xbf16>, vector<128x256xf32> -> vector<128x256xf32>
    %4 = vector.extract_strided_slice %3 {offsets = [0, 0], sizes = [128, 128], strides = [1, 1]} : vector<128x256xf32> to vector<128x128xf32>
    %c0_4 = arith.constant 0 : index
    %c0_5 = arith.constant 0 : index
    %5 = vector.load %arg5[%c0_4, %c0_5] : memref<8x128xf32, #tpu.memory_space<vmem>>, vector<1x128xf32>
    %6 = vector.broadcast %5 : vector<1x128xf32> to vector<128x128xf32>
    %7 = arith.addf %4, %6 : vector<128x128xf32>
    %c0_6 = arith.constant 0 : index
    %c0_7 = arith.constant 0 : index
    %8 = vector.load %arg2[%c0_6, %c0_7] : memref<128x128xbf16, #tpu.memory_space<vmem>>, vector<128x128xbf16>
    %9 = arith.truncf %7 : vector<128x128xf32> to vector<128x128xbf16>
    %cst_8 = arith.constant dense<0.000000e+00> : vector<128x128xf32>
    %10 = tpu.matmul %8, %9, %cst_8 {dimension_numbers = #tpu.dot_dimension_numbers<[1], [0], [0], [1], [0, 0, 1, 1], [], []>} : vector<128x128xbf16>, vector<128x128xbf16>, vector<128x128xf32> -> vector<128x128xf32>
    %11 = arith.truncf %10 : vector<128x128xf32> to vector<128x128xbf16>
    %c0_9 = arith.constant 0 : index
    %c0_10 = arith.constant 0 : index
    %c0_11 = arith.constant 0 : index
    %12 = vector.load %arg4[%c0_9, %c0_10, %c0_11] : memref<4x128x128xbf16, #tpu.memory_space<vmem>>, vector<1x128x128xbf16>
    %13 = vector.shape_cast %12 : vector<1x128x128xbf16> to vector<128x128xbf16>
    %cst_12 = arith.constant dense<0.000000e+00> : vector<128x128xf32>
    %14 = tpu.matmul %11, %13, %cst_12 {dimension_numbers = #tpu.dot_dimension_numbers<[1], [0], [0], [1], [0, 0, 1, 1], [], []>} : vector<128x128xbf16>, vector<128x128xbf16>, vector<128x128xf32> -> vector<128x128xf32>
    %15 = vector.extract_strided_slice %3 {offsets = [0, 128], sizes = [128, 128], strides = [1, 1]} : vector<128x256xf32> to vector<128x128xf32>
    %16 = arith.addf %14, %15 : vector<128x128xf32>
    %c1 = arith.constant 1 : index
    %c0_13 = arith.constant 0 : index
    %17 = vector.load %arg5[%c1, %c0_13] : memref<8x128xf32, #tpu.memory_space<vmem>>, vector<1x128xf32>
    %18 = vector.broadcast %17 : vector<1x128xf32> to vector<128x128xf32>
    %19 = arith.addf %16, %18 : vector<128x128xf32>
    %cst_14 = arith.constant 0.000000e+00 : f32
    %20 = vector.broadcast %cst_14 : f32 to vector<128x128xf32>
    %21 = arith.maximumf %19, %20 : vector<128x128xf32>
    %c0_15 = arith.constant 0 : index
    %c0_16 = arith.constant 0 : index
    %c0_17 = arith.constant 0 : index
    %22 = vector.load %arg6[%c0_15, %c0_16, %c0_17] : memref<3x128x128xf32, #tpu.memory_space<vmem>>, vector<1x128x128xf32>
    %23 = vector.shape_cast %22 : vector<1x128x128xf32> to vector<128x128xf32>
    %24 = arith.mulf %21, %23 : vector<128x128xf32>
    %25 = arith.truncf %24 : vector<128x128xf32> to vector<128x128xbf16>
    %c1_18 = arith.constant 1 : index
    %c0_19 = arith.constant 0 : index
    %c0_20 = arith.constant 0 : index
    %26 = vector.load %arg3[%c1_18, %c0_19, %c0_20] : memref<2x128x256xbf16, #tpu.memory_space<vmem>>, vector<1x128x256xbf16>
    %27 = vector.shape_cast %26 : vector<1x128x256xbf16> to vector<128x256xbf16>
    %cst_21 = arith.constant dense<0.000000e+00> : vector<128x256xf32>
    %28 = tpu.matmul %25, %27, %cst_21 {dimension_numbers = #tpu.dot_dimension_numbers<[1], [0], [0], [1], [0, 0, 1, 1], [], []>} : vector<128x128xbf16>, vector<128x256xbf16>, vector<128x256xf32> -> vector<128x256xf32>
    %29 = vector.extract_strided_slice %28 {offsets = [0, 0], sizes = [128, 128], strides = [1, 1]} : vector<128x256xf32> to vector<128x128xf32>
    %c2 = arith.constant 2 : index
    %c0_22 = arith.constant 0 : index
    %30 = vector.load %arg5[%c2, %c0_22] : memref<8x128xf32, #tpu.memory_space<vmem>>, vector<1x128xf32>
    %31 = vector.broadcast %30 : vector<1x128xf32> to vector<128x128xf32>
    %32 = arith.addf %29, %31 : vector<128x128xf32>
    %c0_23 = arith.constant 0 : index
    %c0_24 = arith.constant 0 : index
    %33 = vector.load %arg2[%c0_23, %c0_24] : memref<128x128xbf16, #tpu.memory_space<vmem>>, vector<128x128xbf16>
    %34 = arith.truncf %32 : vector<128x128xf32> to vector<128x128xbf16>
    %cst_25 = arith.constant dense<0.000000e+00> : vector<128x128xf32>
    %35 = tpu.matmul %33, %34, %cst_25 {dimension_numbers = #tpu.dot_dimension_numbers<[1], [0], [0], [1], [0, 0, 1, 1], [], []>} : vector<128x128xbf16>, vector<128x128xbf16>, vector<128x128xf32> -> vector<128x128xf32>
    %36 = arith.truncf %35 : vector<128x128xf32> to vector<128x128xbf16>
    %c1_26 = arith.constant 1 : index
    %c0_27 = arith.constant 0 : index
    %c0_28 = arith.constant 0 : index
    %37 = vector.load %arg4[%c1_26, %c0_27, %c0_28] : memref<4x128x128xbf16, #tpu.memory_space<vmem>>, vector<1x128x128xbf16>
    %38 = vector.shape_cast %37 : vector<1x128x128xbf16> to vector<128x128xbf16>
    %cst_29 = arith.constant dense<0.000000e+00> : vector<128x128xf32>
    %39 = tpu.matmul %36, %38, %cst_29 {dimension_numbers = #tpu.dot_dimension_numbers<[1], [0], [0], [1], [0, 0, 1, 1], [], []>} : vector<128x128xbf16>, vector<128x128xbf16>, vector<128x128xf32> -> vector<128x128xf32>
    %40 = vector.extract_strided_slice %28 {offsets = [0, 128], sizes = [128, 128], strides = [1, 1]} : vector<128x256xf32> to vector<128x128xf32>
    %41 = arith.addf %39, %40 : vector<128x128xf32>
    %c3 = arith.constant 3 : index
    %c0_30 = arith.constant 0 : index
    %42 = vector.load %arg5[%c3, %c0_30] : memref<8x128xf32, #tpu.memory_space<vmem>>, vector<1x128xf32>
    %43 = vector.broadcast %42 : vector<1x128xf32> to vector<128x128xf32>
    %44 = arith.addf %41, %43 : vector<128x128xf32>
    %cst_31 = arith.constant 0.000000e+00 : f32
    %45 = vector.broadcast %cst_31 : f32 to vector<128x128xf32>
    %46 = arith.maximumf %44, %45 : vector<128x128xf32>
    %c1_32 = arith.constant 1 : index
    %c0_33 = arith.constant 0 : index
    %c0_34 = arith.constant 0 : index
    %47 = vector.load %arg6[%c1_32, %c0_33, %c0_34] : memref<3x128x128xf32, #tpu.memory_space<vmem>>, vector<1x128x128xf32>
    %48 = vector.shape_cast %47 : vector<1x128x128xf32> to vector<128x128xf32>
    %49 = arith.mulf %46, %48 : vector<128x128xf32>
    %50 = arith.truncf %49 : vector<128x128xf32> to vector<128x128xbf16>
    %c1_35 = arith.constant 1 : index
    %c0_36 = arith.constant 0 : index
    %c0_37 = arith.constant 0 : index
    %51 = vector.load %arg3[%c1_35, %c0_36, %c0_37] : memref<2x128x256xbf16, #tpu.memory_space<vmem>>, vector<1x128x256xbf16>
    %52 = vector.shape_cast %51 : vector<1x128x256xbf16> to vector<128x256xbf16>
    %cst_38 = arith.constant dense<0.000000e+00> : vector<128x256xf32>
    %53 = tpu.matmul %50, %52, %cst_38 {dimension_numbers = #tpu.dot_dimension_numbers<[1], [0], [0], [1], [0, 0, 1, 1], [], []>} : vector<128x128xbf16>, vector<128x256xbf16>, vector<128x256xf32> -> vector<128x256xf32>
    %54 = vector.extract_strided_slice %53 {offsets = [0, 0], sizes = [128, 128], strides = [1, 1]} : vector<128x256xf32> to vector<128x128xf32>
    %c2_39 = arith.constant 2 : index
    %c0_40 = arith.constant 0 : index
    %55 = vector.load %arg5[%c2_39, %c0_40] : memref<8x128xf32, #tpu.memory_space<vmem>>, vector<1x128xf32>
    %56 = vector.broadcast %55 : vector<1x128xf32> to vector<128x128xf32>
    %57 = arith.addf %54, %56 : vector<128x128xf32>
    %c0_41 = arith.constant 0 : index
    %c0_42 = arith.constant 0 : index
    %58 = vector.load %arg2[%c0_41, %c0_42] : memref<128x128xbf16, #tpu.memory_space<vmem>>, vector<128x128xbf16>
    %59 = arith.truncf %57 : vector<128x128xf32> to vector<128x128xbf16>
    %cst_43 = arith.constant dense<0.000000e+00> : vector<128x128xf32>
    %60 = tpu.matmul %58, %59, %cst_43 {dimension_numbers = #tpu.dot_dimension_numbers<[1], [0], [0], [1], [0, 0, 1, 1], [], []>} : vector<128x128xbf16>, vector<128x128xbf16>, vector<128x128xf32> -> vector<128x128xf32>
    %61 = arith.truncf %60 : vector<128x128xf32> to vector<128x128xbf16>
    %c1_44 = arith.constant 1 : index
    %c0_45 = arith.constant 0 : index
    %c0_46 = arith.constant 0 : index
    %62 = vector.load %arg4[%c1_44, %c0_45, %c0_46] : memref<4x128x128xbf16, #tpu.memory_space<vmem>>, vector<1x128x128xbf16>
    %63 = vector.shape_cast %62 : vector<1x128x128xbf16> to vector<128x128xbf16>
    %cst_47 = arith.constant dense<0.000000e+00> : vector<128x128xf32>
    %64 = tpu.matmul %61, %63, %cst_47 {dimension_numbers = #tpu.dot_dimension_numbers<[1], [0], [0], [1], [0, 0, 1, 1], [], []>} : vector<128x128xbf16>, vector<128x128xbf16>, vector<128x128xf32> -> vector<128x128xf32>
    %65 = vector.extract_strided_slice %53 {offsets = [0, 128], sizes = [128, 128], strides = [1, 1]} : vector<128x256xf32> to vector<128x128xf32>
    %66 = arith.addf %64, %65 : vector<128x128xf32>
    %c3_48 = arith.constant 3 : index
    %c0_49 = arith.constant 0 : index
    %67 = vector.load %arg5[%c3_48, %c0_49] : memref<8x128xf32, #tpu.memory_space<vmem>>, vector<1x128xf32>
    %68 = vector.broadcast %67 : vector<1x128xf32> to vector<128x128xf32>
    %69 = arith.addf %66, %68 : vector<128x128xf32>
    %cst_50 = arith.constant 0.000000e+00 : f32
    %70 = vector.broadcast %cst_50 : f32 to vector<128x128xf32>
    %71 = arith.maximumf %69, %70 : vector<128x128xf32>
    %c2_51 = arith.constant 2 : index
    %c0_52 = arith.constant 0 : index
    %c0_53 = arith.constant 0 : index
    %72 = vector.load %arg6[%c2_51, %c0_52, %c0_53] : memref<3x128x128xf32, #tpu.memory_space<vmem>>, vector<1x128x128xf32>
    %73 = vector.shape_cast %72 : vector<1x128x128xf32> to vector<128x128xf32>
    %74 = arith.mulf %71, %73 : vector<128x128xf32>
    %c0_54 = arith.constant 0 : index
    %c0_55 = arith.constant 0 : index
    %75 = vector.load %arg7[%c0_54, %c0_55] : memref<128x128xf32, #tpu.memory_space<vmem>>, vector<128x128xf32>
    tpu.vector_store %arg7[%c0_54, %c0_55], %74 {strides = array<i32>} : memref<128x128xf32, #tpu.memory_space<vmem>>, vector<128x128xf32>,
    %76 = arith.truncf %74 : vector<128x128xf32> to vector<128x128xbf16>
    %c2_56 = arith.constant 2 : index
    %c0_57 = arith.constant 0 : index
    %c0_58 = arith.constant 0 : index
    %77 = vector.load %arg4[%c2_56, %c0_57, %c0_58] : memref<4x128x128xbf16, #tpu.memory_space<vmem>>, vector<1x128x128xbf16>
    %78 = vector.shape_cast %77 : vector<1x128x128xbf16> to vector<128x128xbf16>
    %cst_59 = arith.constant dense<0.000000e+00> : vector<128x128xf32>
    %79 = tpu.matmul %76, %78, %cst_59 {dimension_numbers = #tpu.dot_dimension_numbers<[1], [0], [0], [1], [0, 0, 1, 1], [], []>} : vector<128x128xbf16>, vector<128x128xbf16>, vector<128x128xf32> -> vector<128x128xf32>
    %c4 = arith.constant 4 : index
    %c0_60 = arith.constant 0 : index
    %80 = vector.load %arg5[%c4, %c0_60] : memref<8x128xf32, #tpu.memory_space<vmem>>, vector<1x128xf32>
    %81 = vector.broadcast %80 : vector<1x128xf32> to vector<128x128xf32>
    %82 = arith.addf %79, %81 : vector<128x128xf32>
    %cst_61 = arith.constant 0.000000e+00 : f32
    %83 = vector.broadcast %cst_61 : f32 to vector<128x128xf32>
    %84 = arith.maximumf %82, %83 : vector<128x128xf32>
    %85 = arith.truncf %84 : vector<128x128xf32> to vector<128x128xbf16>
    %c3_62 = arith.constant 3 : index
    %c0_63 = arith.constant 0 : index
    %c0_64 = arith.constant 0 : index
    %86 = vector.load %arg4[%c3_62, %c0_63, %c0_64] : memref<4x128x128xbf16, #tpu.memory_space<vmem>>, vector<1x128x128xbf16>
    %87 = vector.shape_cast %86 : vector<1x128x128xbf16> to vector<128x128xbf16>
    %cst_65 = arith.constant dense<0.000000e+00> : vector<128x128xf32>
    %88 = tpu.matmul %85, %87, %cst_65 {dimension_numbers = #tpu.dot_dimension_numbers<[1], [0], [0], [1], [0, 0, 1, 1], [], []>} : vector<128x128xbf16>, vector<128x128xbf16>, vector<128x128xf32> -> vector<128x128xf32>
    %c5 = arith.constant 5 : index
    %c0_66 = arith.constant 0 : index
    %89 = vector.load %arg5[%c5, %c0_66] : memref<8x128xf32, #tpu.memory_space<vmem>>, vector<1x128xf32>
    %90 = vector.broadcast %89 : vector<1x128xf32> to vector<128x128xf32>
    %91 = arith.addf %88, %90 : vector<128x128xf32>
    %c0_67 = arith.constant 0 : index
    %c0_68 = arith.constant 0 : index
    %92 = vector.load %arg8[%c0_67, %c0_68] : memref<128x128xf32, #tpu.memory_space<vmem>>, vector<128x128xf32>
    tpu.vector_store %arg8[%c0_67, %c0_68], %91 {strides = array<i32>} : memref<128x128xf32, #tpu.memory_space<vmem>>, vector<128x128xf32>,
    return
  }
  func.func @transform_0(%arg0: i32) -> (i32, i32) {
    %c0_i32 = arith.constant 0 : i32
    %c0_i32_0 = arith.constant 0 : i32
    %c0_i32_1 = arith.constant 0 : i32
    return %c0_i32, %c0_i32_0 : i32, i32
  }
  func.func @transform_1(%arg0: i32) -> (i32, i32) {
    %c0_i32 = arith.constant 0 : i32
    %c0_i32_0 = arith.constant 0 : i32
    %c0_i32_1 = arith.constant 0 : i32
    return %c0_i32, %c0_i32_0 : i32, i32
  }
  func.func @transform_2(%arg0: i32) -> (i32, i32, i32) {
    %c0_i32 = arith.constant 0 : i32
    %c0_i32_0 = arith.constant 0 : i32
    %c0_i32_1 = arith.constant 0 : i32
    %c0_i32_2 = arith.constant 0 : i32
    return %c0_i32, %c0_i32_0, %c0_i32_1 : i32, i32, i32
  }
  func.func @transform_3(%arg0: i32) -> (i32, i32, i32) {
    %c0_i32 = arith.constant 0 : i32
    %c0_i32_0 = arith.constant 0 : i32
    %c0_i32_1 = arith.constant 0 : i32
    %c0_i32_2 = arith.constant 0 : i32
    return %c0_i32, %c0_i32_0, %c0_i32_1 : i32, i32, i32
  }
  func.func @transform_4(%arg0: i32) -> (i32, i32) {
    %c0_i32 = arith.constant 0 : i32
    %c0_i32_0 = arith.constant 0 : i32
    %c0_i32_1 = arith.constant 0 : i32
    return %c0_i32, %c0_i32_0 : i32, i32
  }
  func.func @transform_5(%arg0: i32) -> (i32, i32, i32) {
    %c0_i32 = arith.constant 0 : i32
    %c0_i32_0 = arith.constant 0 : i32
    %c0_i32_1 = arith.constant 0 : i32
    %c0_i32_2 = arith.constant 0 : i32
    return %c0_i32, %c0_i32_0, %c0_i32_1 : i32, i32, i32
  }
  func.func @transform_6(%arg0: i32) -> (i32, i32) {
    %c0_i32 = arith.constant 0 : i32
    %c0_i32_0 = arith.constant 0 : i32
    %c0_i32_1 = arith.constant 0 : i32
    return %c0_i32, %c0_i32_0 : i32, i32
  }
  func.func @transform_7(%arg0: i32) -> (i32, i32) {
    %c0_i32 = arith.constant 0 : i32
    %c0_i32_0 = arith.constant 0 : i32
    %c0_i32_1 = arith.constant 0 : i32
    return %c0_i32, %c0_i32_0 : i32, i32
  }
}

</mosaic_0001>

<llo_original>
// kernel: tpu_custom_call.1
$region0: #{tpu_custom_call.1}
  #allocation0 [shape = 'u32[]', space=smem, size = 0x4, offset = 0x4, fixed_abs, tag = 'smem constant byte address 0x4 - core index']
  #allocation1 [shape = 'u32[144,128]{1,0:T(1,128)}', space=vmem, size = 0x12000, scoped, tag = 'internal scratch']
  %s0 = inlined_call_operand.hbm [shape: bf16[128,128], index: 0, kind: input, shape index: {}]
  %s1 = inlined_call_operand.hbm [shape: bf16[128,128], index: 1, kind: input, shape index: {}]
  %s2 = inlined_call_operand.hbm [shape: bf16[2,128,256], index: 2, kind: input, shape index: {}]
  %s3 = inlined_call_operand.hbm [shape: bf16[4,128,128], index: 3, kind: input, shape index: {}]
  %s4 = inlined_call_operand.vmem [shape: f32[8,128], index: 4, kind: input, shape index: {}]
  %s5 = inlined_call_operand.hbm [shape: f32[3,128,128], index: 5, kind: input, shape index: {}]
  %s6 = inlined_call_operand.hbm [shape: f32[128,128], index: 6, kind: output, shape index: {0}]
  %s7 = inlined_call_operand.hbm [shape: f32[128,128], index: 7, kind: output, shape index: {1}]
  %8 = xla_tuple %s6, %s7
  %s9 = sld [smem:[#allocation0]]
  $region62: #{tpu_custom_call.1} parent=0
    _
  %s11 = ssub.s32 1, %s9
  %s12 = scalar_select 0, %s11, %s9
  $region1: #{tpu_custom_call.1} parent=0
    #allocation2 [shape = 'u8[32768]{0}', space=vmem, size = 0x8000, scoped, tag = 'input window, operand 0, single buffered']
    #allocation3 [shape = 's32[1]{0}', space=sflag, size = 0x4, scoped, tag = 'scoped memory for tpu_custom_call.1']
    #allocation4 [shape = 's32[1]{0}', space=sflag, size = 0x4, scoped, tag = 'scoped memory for tpu_custom_call.1']
    #allocation5 [shape = 'u8[32768]{0}', space=vmem, size = 0x8000, scoped, tag = 'input window, operand 1, single buffered']
    #allocation6 [shape = 's32[1]{0}', space=sflag, size = 0x4, scoped, tag = 'scoped memory for tpu_custom_call.1']
    #allocation7 [shape = 'u8[131072]{0}', space=vmem, size = 0x20000, scoped, tag = 'input window, operand 2, single buffered']
    #allocation8 [shape = 'u8[131072]{0}', space=vmem, size = 0x20000, scoped, tag = 'input window, operand 3, single buffered']
    #allocation9 [shape = 's32[1]{0}', space=sflag, size = 0x4, scoped, tag = 'scoped memory for tpu_custom_call.1']
    #allocation10 [shape = 'u8[196608]{0}', space=vmem, size = 0x30000, scoped, tag = 'input window, operand 5, single buffered']
    #allocation11 [shape = 'u8[65536]{0}', space=vmem, size = 0x10000, scoped, tag = 'output window, operand 0, single buffered']
    #allocation12 [shape = 'u8[65536]{0}', space=vmem, size = 0x10000, scoped, tag = 'output window, operand 1, single buffered']
    #allocation13 [shape = 's32[1]{0}', space=sflag, size = 0x4, scoped, tag = 'scoped memory for tpu_custom_call.1']
    %13 = vsyncpa [#allocation3], 0
    %14 = vsyncpa [#allocation6], 0
    %15 = vsyncpa [#allocation9], 0
    %16 = vsyncpa [#allocation4], 0
    %17 = vsyncpa [#allocation13], 0
    // Predicated region
    $region2: #{tpu_custom_call.1} parent=1 // pred_check
      _
    $region3: #{tpu_custom_call.1} parent=1 // pred_check_branch
      %19 = sbr.rel (0) target = $region5
    $region4: #{tpu_custom_call.1} parent=1 // pred_region
      %s21 = ssub.s32 1024, 1024
      %22 = vsyncadd [#allocation3], %s21
      %s23 = sshll.u32 [#allocation2], 4
      %s24 = int_to_ptr.vmem [resolvable:$true] %s23
      %29 = dma.hbm_to_vmem [thread:$0]  %s0, 1024, %s24, [#allocation3], 64, 64, 4
    $region5: #{tpu_custom_call.1} parent=1 // pred_fallthru
      _
    // Predicated region
    $region6: #{tpu_custom_call.1} parent=1 // pred_check
      _
    $region7: #{tpu_custom_call.1} parent=1 // pred_check_branch
      %31 = sbr.rel (0) target = $region9
    $region8: #{tpu_custom_call.1} parent=1 // pred_region
      %s33 = ssub.s32 1024, 1024
      %34 = vsyncadd [#allocation6], %s33
      %s35 = sshll.u32 [#allocation5], 4
      %s36 = int_to_ptr.vmem [resolvable:$true] %s35
      %41 = dma.hbm_to_vmem [thread:$0]  %s1, 1024, %s36, [#allocation6], 64, 64, 4
    $region9: #{tpu_custom_call.1} parent=1 // pred_fallthru
      _
    // Predicated region
    $region10: #{tpu_custom_call.1} parent=1 // pred_check
      _
    $region11: #{tpu_custom_call.1} parent=1 // pred_check_branch
      %43 = sbr.rel (0) target = $region13
    $region12: #{tpu_custom_call.1} parent=1 // pred_region
      %s45 = ssub.s32 4096, 4096
      %46 = vsyncadd [#allocation6], %s45
      %s47 = sshll.u32 [#allocation7], 4
      %s48 = int_to_ptr.vmem [resolvable:$true] %s47
      %53 = dma.hbm_to_vmem [thread:$0]  %s2, 4096, %s48, [#allocation6], 128, 128, 8
    $region13: #{tpu_custom_call.1} parent=1 // pred_fallthru
      _
    // Predicated region
    $region14: #{tpu_custom_call.1} parent=1 // pred_check
      _
    $region15: #{tpu_custom_call.1} parent=1 // pred_check_branch
      %55 = sbr.rel (0) target = $region17
    $region16: #{tpu_custom_call.1} parent=1 // pred_region
      %s57 = ssub.s32 4096, 4096
      %58 = vsyncadd [#allocation9], %s57
      %s59 = sshll.u32 [#allocation8], 4
      %s60 = int_to_ptr.vmem [resolvable:$true] %s59
      %65 = dma.hbm_to_vmem [thread:$0]  %s3, 4096, %s60, [#allocation9], 64, 64, 4
    $region17: #{tpu_custom_call.1} parent=1 // pred_fallthru
      _
    // Predicated region
    $region18: #{tpu_custom_call.1} parent=1 // pred_check
      _
    $region19: #{tpu_custom_call.1} parent=1 // pred_check_branch
      %67 = sbr.rel (0) target = $region21
    $region20: #{tpu_custom_call.1} parent=1 // pred_region
      _
    $region21: #{tpu_custom_call.1} parent=1 // pred_fallthru
      _
    // Predicated region
    $region22: #{tpu_custom_call.1} parent=1 // pred_check
      _
    $region23: #{tpu_custom_call.1} parent=1 // pred_check_branch
      %69 = sbr.rel (0) target = $region25
    $region24: #{tpu_custom_call.1} parent=1 // pred_region
      %s71 = ssub.s32 6144, 6144
      %72 = vsyncadd [#allocation9], %s71
      %s73 = sshll.u32 [#allocation10], 4
      %s74 = int_to_ptr.vmem [resolvable:$true] %s73
      %79 = dma.hbm_to_vmem [thread:$0]  %s5, 6144, %s74, [#allocation9], 128, 128, 8
    $region25: #{tpu_custom_call.1} parent=1 // pred_fallthru
      _
    // Predicated region
    $region26: #{tpu_custom_call.1} parent=1 // pred_check
      _
    $region27: #{tpu_custom_call.1} parent=1 // pred_check_branch
      %81 = sbr.rel (0) target = $region29
    $region28: #{tpu_custom_call.1} parent=1 // pred_region
      %82 = dma.done [#allocation3], 1024
    $region29: #{tpu_custom_call.1} parent=1 // pred_fallthru
      _
    // Predicated region
    $region30: #{tpu_custom_call.1} parent=1 // pred_check
      _
    $region31: #{tpu_custom_call.1} parent=1 // pred_check_branch
      %84 = sbr.rel (0) target = $region33
    $region32: #{tpu_custom_call.1} parent=1 // pred_region
      %85 = dma.done [#allocation6], 1024
    $region33: #{tpu_custom_call.1} parent=1 // pred_fallthru
      _
    // Predicated region
    $region34: #{tpu_custom_call.1} parent=1 // pred_check
      _
    $region35: #{tpu_custom_call.1} parent=1 // pred_check_branch
      %87 = sbr.rel (0) target = $region37
    $region36: #{tpu_custom_call.1} parent=1 // pred_region
      %88 = dma.done [#allocation6], 4096
    $region37: #{tpu_custom_call.1} parent=1 // pred_fallthru
      _
    // Predicated region
    $region38: #{tpu_custom_call.1} parent=1 // pred_check
      _
    $region39: #{tpu_custom_call.1} parent=1 // pred_check_branch
      %90 = sbr.rel (0) target = $region41
    $region40: #{tpu_custom_call.1} parent=1 // pred_region
      %91 = dma.done [#allocation9], 4096
    $region41: #{tpu_custom_call.1} parent=1 // pred_fallthru
      _
    // Predicated region
    $region42: #{tpu_custom_call.1} parent=1 // pred_check
      _
    $region43: #{tpu_custom_call.1} parent=1 // pred_check_branch
      %93 = sbr.rel (0) target = $region45
    $region44: #{tpu_custom_call.1} parent=1 // pred_region
      %94 = dma.done [#allocation9], 6144
    $region45: #{tpu_custom_call.1} parent=1 // pred_fallthru
      _
    %v96 = vld [vmem:[#allocation2] sm:$0xf]
    %v97 = vld [vmem:[#allocation2 + $0x4] sm:$0xf]
    %v98 = vld [vmem:[#allocation2 + $0x8] sm:$0xf]
    %v99 = vld [vmem:[#allocation2 + $0xc] sm:$0xf]
    %v100 = vld [vmem:[#allocation2 + $0x10] sm:$0xf]
    %v101 = vld [vmem:[#allocation2 + $0x14] sm:$0xf]
    %v102 = vld [vmem:[#allocation2 + $0x18] sm:$0xf]
    %v103 = vld [vmem:[#allocation2 + $0x1c] sm:$0xf]
    %v104 = vld [vmem:[#allocation2 + $0x20] sm:$0xf]
    %v105 = vld [vmem:[#allocation2 + $0x24] sm:$0xf]
    %v106 = vld [vmem:[#allocation2 + $0x28] sm:$0xf]
    %v107 = vld [vmem:[#allocation2 + $0x2c] sm:$0xf]
    %v108 = vld [vmem:[#allocation2 + $0x30] sm:$0xf]
    %v109 = vld [vmem:[#allocation2 + $0x34] sm:$0xf]
    %v110 = vld [vmem:[#allocation2 + $0x38] sm:$0xf]
    %v111 = vld [vmem:[#allocation2 + $0x3c] sm:$0xf]
    %v112 = vld [vmem:[#allocation7] sm:$0xff]
    %v113 = vld [vmem:[#allocation7 + $0x8] sm:$0xff]
    %v114 = vld [vmem:[#allocation7 + $0x10] sm:$0xff]
    %v115 = vld [vmem:[#allocation7 + $0x18] sm:$0xff]
    %v116 = vld [vmem:[#allocation7 + $0x20] sm:$0xff]
    %v117 = vld [vmem:[#allocation7 + $0x28] sm:$0xff]
    %v118 = vld [vmem:[#allocation7 + $0x30] sm:$0xff]
    %v119 = vld [vmem:[#allocation7 + $0x38] sm:$0xff]
    %v120 = vld [vmem:[#allocation7 + $0x40] sm:$0xff]
    %v121 = vld [vmem:[#allocation7 + $0x48] sm:$0xff]
    %v122 = vld [vmem:[#allocation7 + $0x50] sm:$0xff]
    %v123 = vld [vmem:[#allocation7 + $0x58] sm:$0xff]
    %v124 = vld [vmem:[#allocation7 + $0x60] sm:$0xff]
    %v125 = vld [vmem:[#allocation7 + $0x68] sm:$0xff]
    %v126 = vld [vmem:[#allocation7 + $0x70] sm:$0xff]
    %v127 = vld [vmem:[#allocation7 + $0x78] sm:$0xff]
    %v144 = vunpack.c.l.b16 %v96
    %v145 = vunpack.c.l.b16 %v97
    %v146 = vunpack.c.l.b16 %v98
    %v147 = vunpack.c.l.b16 %v99
    %v148 = vunpack.c.l.b16 %v100
    %v149 = vunpack.c.l.b16 %v101
    %v150 = vunpack.c.l.b16 %v102
    %v151 = vunpack.c.l.b16 %v103
    %v152 = vunpack.c.l.b16 %v104
    %v153 = vunpack.c.l.b16 %v105
    %v154 = vunpack.c.l.b16 %v106
    %v155 = vunpack.c.l.b16 %v107
    %v156 = vunpack.c.l.b16 %v108
    %v157 = vunpack.c.l.b16 %v109
    %v158 = vunpack.c.l.b16 %v110
    %v159 = vunpack.c.l.b16 %v111
    %v160 = vpack.c.b16 %v145, %v144
    %v161 = vpack.c.b16 %v147, %v146
    %v162 = vpack.c.b16 %v149, %v148
    %v163 = vpack.c.b16 %v151, %v150
    %v164 = vpack.c.b16 %v153, %v152
    %v165 = vpack.c.b16 %v155, %v154
    %v166 = vpack.c.b16 %v157, %v156
    %v167 = vpack.c.b16 %v159, %v158
    %v192 = vunpack.c.l.b16 %v112
    %v193 = vunpack.c.h.b16 %v112
    %v194 = vunpack.c.l.b16 %v113
    %v195 = vunpack.c.h.b16 %v113
    %v196 = vunpack.c.l.b16 %v114
    %v197 = vunpack.c.h.b16 %v114
    %v198 = vunpack.c.l.b16 %v115
    %v199 = vunpack.c.h.b16 %v115
    %v200 = vunpack.c.l.b16 %v116
    %v201 = vunpack.c.h.b16 %v116
    %v202 = vunpack.c.l.b16 %v117
    %v203 = vunpack.c.h.b16 %v117
    %v204 = vunpack.c.l.b16 %v118
    %v205 = vunpack.c.h.b16 %v118
    %v206 = vunpack.c.l.b16 %v119
    %v207 = vunpack.c.h.b16 %v119
    %v208 = vunpack.c.l.b16 %v120
    %v209 = vunpack.c.h.b16 %v120
    %v210 = vunpack.c.l.b16 %v121
    %v211 = vunpack.c.h.b16 %v121
    %v212 = vunpack.c.l.b16 %v122
    %v213 = vunpack.c.h.b16 %v122
    %v214 = vunpack.c.l.b16 %v123
    %v215 = vunpack.c.h.b16 %v123
    %v216 = vunpack.c.l.b16 %v124
    %v217 = vunpack.c.h.b16 %v124
    %v218 = vunpack.c.l.b16 %v125
    %v219 = vunpack.c.h.b16 %v125
    %v220 = vunpack.c.l.b16 %v126
    %v221 = vunpack.c.h.b16 %v126
    %v222 = vunpack.c.l.b16 %v127
    %v223 = vunpack.c.h.b16 %v127
    %v224 = vpack.c.b16 %v194, %v192
    %v225 = vpack.c.b16 %v195, %v193
    %v226 = vpack.c.b16 %v198, %v196
    %v227 = vpack.c.b16 %v199, %v197
    %v228 = vpack.c.b16 %v202, %v200
    %v229 = vpack.c.b16 %v203, %v201
    %v230 = vpack.c.b16 %v206, %v204
    %v231 = vpack.c.b16 %v207, %v205
    %v232 = vpack.c.b16 %v210, %v208
    %v233 = vpack.c.b16 %v211, %v209
    %v234 = vpack.c.b16 %v214, %v212
    %v235 = vpack.c.b16 %v215, %v213
    %v236 = vpack.c.b16 %v218, %v216
    %v237 = vpack.c.b16 %v219, %v217
    %v238 = vpack.c.b16 %v222, %v220
    %v239 = vpack.c.b16 %v223, %v221
    %256 = vmatprep.subr.bf16.mxu0 %v225
    %257 = vmatpush1.bf16.msra.mxu0 %v224
    %258 = vmatprep.subr.bf16.mxu0 %v227
    %259 = vmatpush1.bf16.msra.mxu0 %v226
    %260 = vmatprep.subr.bf16.mxu0 %v229
    %261 = vmatpush1.bf16.msra.mxu0 %v228
    %262 = vmatprep.subr.bf16.mxu0 %v231
    %263 = vmatpush1.bf16.msra.mxu0 %v230
    %264 = vmatprep.subr.bf16.mxu0 %v233
    %265 = vmatpush1.bf16.msra.mxu0 %v232
    %266 = vmatprep.subr.bf16.mxu0 %v235
    %267 = vmatpush1.bf16.msra.mxu0 %v234
    %268 = vmatprep.subr.bf16.mxu0 %v237
    %269 = vmatpush1.bf16.msra.mxu0 %v236
    %270 = vmatprep.subr.bf16.mxu0 %v239
    %271 = vmatpush1.bf16.msra.mxu0 %v238
    %272 = vmatprep.subr.bf16.mxu0 0
    %273 = vmatpush1.bf16.msra.mxu0 0
    %274 = vmatprep.subr.bf16.mxu0 0
    %275 = vmatpush1.bf16.msra.mxu0 0
    %276 = vmatprep.subr.bf16.mxu0 0
    %277 = vmatpush1.bf16.msra.mxu0 0
    %278 = vmatprep.subr.bf16.mxu0 0
    %279 = vmatpush1.bf16.msra.mxu0 0
    %280 = vmatprep.subr.bf16.mxu0 0
    %281 = vmatpush1.bf16.msra.mxu0 0
    %282 = vmatprep.subr.bf16.mxu0 0
    %283 = vmatpush1.bf16.msra.mxu0 0
    %284 = vmatprep.subr.bf16.mxu0 0
    %285 = vmatpush1.bf16.msra.mxu0 0
    %286 = vmatprep.subr.bf16.mxu0 0
    %287 = vmatpush1.bf16.msra.mxu0 0
    %288 = vmatprep.mubr.bf16.mxu0 0
    %289 = vmatmul.mubr.bf16.gmra.mrb[0].mxu0 %v160
    %v290 = vpop.f32.mrb[0].mxu0
    %v291 = vadd.f32 0.0, %v290
    %v292 = vpop.f32.mrb[0].mxu0
    %v293 = vadd.f32 0.0, %v292
    %v294 = vpop.f32.mrb[0].mxu0
    %v295 = vadd.f32 0.0, %v294
    %v296 = vpop.f32.mrb[0].mxu0
    %v297 = vadd.f32 0.0, %v296
    %298 = vmatprep.mubr.bf16.mxu0 0
    %299 = vmatmul.mubr.bf16.gmra.mrb[0].mxu0 %v161
    %v300 = vpop.f32.mrb[0].mxu0
    %v301 = vadd.f32 0.0, %v300
    %v302 = vpop.f32.mrb[0].mxu0
    %v303 = vadd.f32 0.0, %v302
    %v304 = vpop.f32.mrb[0].mxu0
    %v305 = vadd.f32 0.0, %v304
    %v306 = vpop.f32.mrb[0].mxu0
    %v307 = vadd.f32 0.0, %v306
    %308 = vmatprep.mubr.bf16.mxu0 0
    %309 = vmatmul.mubr.bf16.gmra.mrb[0].mxu0 %v162
    %v310 = vpop.f32.mrb[0].mxu0
    %v311 = vadd.f32 0.0, %v310
    %v312 = vpop.f32.mrb[0].mxu0
    %v313 = vadd.f32 0.0, %v312
    %v314 = vpop.f32.mrb[0].mxu0
    %v315 = vadd.f32 0.0, %v314
    %v316 = vpop.f32.mrb[0].mxu0
    %v317 = vadd.f32 0.0, %v316
    %318 = vmatprep.mubr.bf16.mxu0 0
    %319 = vmatmul.mubr.bf16.gmra.mrb[0].mxu0 %v163
    %v320 = vpop.f32.mrb[0].mxu0
    %v321 = vadd.f32 0.0, %v320
    %v322 = vpop.f32.mrb[0].mxu0
    %v323 = vadd.f32 0.0, %v322
    %v324 = vpop.f32.mrb[0].mxu0
    %v325 = vadd.f32 0.0, %v324
    %v326 = vpop.f32.mrb[0].mxu0
    %v327 = vadd.f32 0.0, %v326
    %328 = vmatprep.mubr.bf16.mxu0 0
    %329 = vmatmul.mubr.bf16.gmra.mrb[0].mxu0 %v164
    %v330 = vpop.f32.mrb[0].mxu0
    %v331 = vadd.f32 0.0, %v330
    %v332 = vpop.f32.mrb[0].mxu0
    %v333 = vadd.f32 0.0, %v332
    %v334 = vpop.f32.mrb[0].mxu0
    %v335 = vadd.f32 0.0, %v334
    %v336 = vpop.f32.mrb[0].mxu0
    %v337 = vadd.f32 0.0, %v336
    %338 = vmatprep.mubr.bf16.mxu0 0
    %339 = vmatmul.mubr.bf16.gmra.mrb[0].mxu0 %v165
    %v340 = vpop.f32.mrb[0].mxu0
    %v341 = vadd.f32 0.0, %v340
    %v342 = vpop.f32.mrb[0].mxu0
    %v343 = vadd.f32 0.0, %v342
    %v344 = vpop.f32.mrb[0].mxu0
    %v345 = vadd.f32 0.0, %v344
    %v346 = vpop.f32.mrb[0].mxu0
    %v347 = vadd.f32 0.0, %v346
    %348 = vmatprep.mubr.bf16.mxu0 0
    %349 = vmatmul.mubr.bf16.gmra.mrb[0].mxu0 %v166
    %v350 = vpop.f32.mrb[0].mxu0
    %v351 = vadd.f32 0.0, %v350
    %v352 = vpop.f32.mrb[0].mxu0
    %v353 = vadd.f32 0.0, %v352
    %v354 = vpop.f32.mrb[0].mxu0
    %v355 = vadd.f32 0.0, %v354
    %v356 = vpop.f32.mrb[0].mxu0
    %v357 = vadd.f32 0.0, %v356
    %358 = vmatprep.mubr.bf16.mxu0 0
    %359 = vmatmul.mubr.bf16.gmra.mrb[0].mxu0 %v167
    %v360 = vpop.f32.mrb[0].mxu0
    %v361 = vadd.f32 0.0, %v360
    %v362 = vpop.f32.mrb[0].mxu0
    %v363 = vadd.f32 0.0, %v362
    %v364 = vpop.f32.mrb[0].mxu0
    %v365 = vadd.f32 0.0, %v364
    %v366 = vpop.f32.mrb[0].mxu0
    %v367 = vadd.f32 0.0, %v366
    %368 = vdwg.mxu0
    %v369 = vld [vmem:[%s4] sm:$0x1]
    %v370 = vlaneseq
    %v371 = vshrl.u32 %v370, 7
    %v372 = vsub.s32 0, %v371
    %v373 = vrot.slane %v369, %v372
    %v374 = vadd.f32 %v291, %v373
    %v375 = vadd.f32 %v295, %v373
    %v376 = vadd.f32 %v301, %v373
    %v377 = vadd.f32 %v305, %v373
    %v378 = vadd.f32 %v311, %v373
    %v379 = vadd.f32 %v315, %v373
    %v380 = vadd.f32 %v321, %v373
    %v381 = vadd.f32 %v325, %v373
    %v382 = vadd.f32 %v331, %v373
    %v383 = vadd.f32 %v335, %v373
    %v384 = vadd.f32 %v341, %v373
    %v385 = vadd.f32 %v345, %v373
    %v386 = vadd.f32 %v351, %v373
    %v387 = vadd.f32 %v355, %v373
    %v388 = vadd.f32 %v361, %v373
    %v389 = vadd.f32 %v365, %v373
    %v390 = vld [vmem:[#allocation5] sm:$0xf]
    %v391 = vld [vmem:[#allocation5 + $0x4] sm:$0xf]
    %v392 = vld [vmem:[#allocation5 + $0x8] sm:$0xf]
    %v393 = vld [vmem:[#allocation5 + $0xc] sm:$0xf]
    %v394 = vld [vmem:[#allocation5 + $0x10] sm:$0xf]
    %v395 = vld [vmem:[#allocation5 + $0x14] sm:$0xf]
    %v396 = vld [vmem:[#allocation5 + $0x18] sm:$0xf]
    %v397 = vld [vmem:[#allocation5 + $0x1c] sm:$0xf]
    %v398 = vld [vmem:[#allocation5 + $0x20] sm:$0xf]
    %v399 = vld [vmem:[#allocation5 + $0x24] sm:$0xf]
    %v400 = vld [vmem:[#allocation5 + $0x28] sm:$0xf]
    %v401 = vld [vmem:[#allocation5 + $0x2c] sm:$0xf]
    %v402 = vld [vmem:[#allocation5 + $0x30] sm:$0xf]
    %v403 = vld [vmem:[#allocation5 + $0x34] sm:$0xf]
    %v404 = vld [vmem:[#allocation5 + $0x38] sm:$0xf]
    %v405 = vld [vmem:[#allocation5 + $0x3c] sm:$0xf]
    %v406 = vpack.c.bf16 %v375, %v374
    %v407 = vpack.c.bf16 %v377, %v376
    %v408 = vpack.c.bf16 %v379, %v378
    %v409 = vpack.c.bf16 %v381, %v380
    %v410 = vpack.c.bf16 %v383, %v382
    %v411 = vpack.c.bf16 %v385, %v384
    %v412 = vpack.c.bf16 %v387, %v386
    %v413 = vpack.c.bf16 %v389, %v388
    %v430 = vunpack.c.l.b16 %v390
    %v431 = vunpack.c.l.b16 %v391
    %v432 = vunpack.c.l.b16 %v392
    %v433 = vunpack.c.l.b16 %v393
    %v434 = vunpack.c.l.b16 %v394
    %v435 = vunpack.c.l.b16 %v395
    %v436 = vunpack.c.l.b16 %v396
    %v437 = vunpack.c.l.b16 %v397
    %v438 = vunpack.c.l.b16 %v398
    %v439 = vunpack.c.l.b16 %v399
    %v440 = vunpack.c.l.b16 %v400
    %v441 = vunpack.c.l.b16 %v401
    %v442 = vunpack.c.l.b16 %v402
    %v443 = vunpack.c.l.b16 %v403
    %v444 = vunpack.c.l.b16 %v404
    %v445 = vunpack.c.l.b16 %v405
    %v446 = vpack.c.b16 %v431, %v430
    %v447 = vpack.c.b16 %v433, %v432
    %v448 = vpack.c.b16 %v435, %v434
    %v449 = vpack.c.b16 %v437, %v436
    %v450 = vpack.c.b16 %v439, %v438
    %v451 = vpack.c.b16 %v441, %v440
    %v452 = vpack.c.b16 %v443, %v442
    %v453 = vpack.c.b16 %v445, %v444
    %462 = vmatprep.subr.bf16.mxu0 0
    %463 = vmatpush1.bf16.msra.mxu0 %v406
    %464 = vmatprep.subr.bf16.mxu0 0
    %465 = vmatpush1.bf16.msra.mxu0 %v407
    %466 = vmatprep.subr.bf16.mxu0 0
    %467 = vmatpush1.bf16.msra.mxu0 %v408
    %468 = vmatprep.subr.bf16.mxu0 0
    %469 = vmatpush1.bf16.msra.mxu0 %v409
    %470 = vmatprep.subr.bf16.mxu0 0
    %471 = vmatpush1.bf16.msra.mxu0 %v410
    %472 = vmatprep.subr.bf16.mxu0 0
    %473 = vmatpush1.bf16.msra.mxu0 %v411
    %474 = vmatprep.subr.bf16.mxu0 0
    %475 = vmatpush1.bf16.msra.mxu0 %v412
    %476 = vmatprep.subr.bf16.mxu0 0
    %477 = vmatpush1.bf16.msra.mxu0 %v413
    %478 = vmatprep.subr.bf16.mxu0 0
    %479 = vmatpush1.bf16.msra.mxu0 0
    %480 = vmatprep.subr.bf16.mxu0 0
    %481 = vmatpush1.bf16.msra.mxu0 0
    %482 = vmatprep.subr.bf16.mxu0 0
    %483 = vmatpush1.bf16.msra.mxu0 0
    %484 = vmatprep.subr.bf16.mxu0 0
    %485 = vmatpush1.bf16.msra.mxu0 0
    %486 = vmatprep.subr.bf16.mxu0 0
    %487 = vmatpush1.bf16.msra.mxu0 0
    %488 = vmatprep.subr.bf16.mxu0 0
    %489 = vmatpush1.bf16.msra.mxu0 0
    %490 = vmatprep.subr.bf16.mxu0 0
    %491 = vmatpush1.bf16.msra.mxu0 0
    %492 = vmatprep.subr.bf16.mxu0 0
    %493 = vmatpush1.bf16.msra.mxu0 0
    %494 = vmatprep.mubr.bf16.mxu0 0
    %495 = vmatmul.mubr.bf16.gmra.mrb[0].mxu0 %v446
    %v496 = vpop.f32.mrb[0].mxu0
    %v497 = vadd.f32 0.0, %v496
    %v498 = vpop.f32.mrb[0].mxu0
    %v499 = vpop.f32.mrb[0].mxu0
    %v500 = vadd.f32 0.0, %v499
    %v501 = vpop.f32.mrb[0].mxu0
    %502 = vmatprep.mubr.bf16.mxu0 0
    %503 = vmatmul.mubr.bf16.gmra.mrb[0].mxu0 %v447
    %v504 = vpop.f32.mrb[0].mxu0
    %v505 = vadd.f32 0.0, %v504
    %v506 = vpop.f32.mrb[0].mxu0
    %v507 = vpop.f32.mrb[0].mxu0
    %v508 = vadd.f32 0.0, %v507
    %v509 = vpop.f32.mrb[0].mxu0
    %510 = vmatprep.mubr.bf16.mxu0 0
    %511 = vmatmul.mubr.bf16.gmra.mrb[0].mxu0 %v448
    %v512 = vpop.f32.mrb[0].mxu0
    %v513 = vadd.f32 0.0, %v512
    %v514 = vpop.f32.mrb[0].mxu0
    %v515 = vpop.f32.mrb[0].mxu0
    %v516 = vadd.f32 0.0, %v515
    %v517 = vpop.f32.mrb[0].mxu0
    %518 = vmatprep.mubr.bf16.mxu0 0
    %519 = vmatmul.mubr.bf16.gmra.mrb[0].mxu0 %v449
    %v520 = vpop.f32.mrb[0].mxu0
    %v521 = vadd.f32 0.0, %v520
    %v522 = vpop.f32.mrb[0].mxu0
    %v523 = vpop.f32.mrb[0].mxu0
    %v524 = vadd.f32 0.0, %v523
    %v525 = vpop.f32.mrb[0].mxu0
    %526 = vmatprep.mubr.bf16.mxu0 0
    %527 = vmatmul.mubr.bf16.gmra.mrb[0].mxu0 %v450
    %v528 = vpop.f32.mrb[0].mxu0
    %v529 = vadd.f32 0.0, %v528
    %v530 = vpop.f32.mrb[0].mxu0
    %v531 = vpop.f32.mrb[0].mxu0
    %v532 = vadd.f32 0.0, %v531
    %v533 = vpop.f32.mrb[0].mxu0
    %534 = vmatprep.mubr.bf16.mxu0 0
    %535 = vmatmul.mubr.bf16.gmra.mrb[0].mxu0 %v451
    %v536 = vpop.f32.mrb[0].mxu0
    %v537 = vadd.f32 0.0, %v536
    %v538 = vpop.f32.mrb[0].mxu0
    %v539 = vpop.f32.mrb[0].mxu0
    %v540 = vadd.f32 0.0, %v539
    %v541 = vpop.f32.mrb[0].mxu0
    %542 = vmatprep.mubr.bf16.mxu0 0
    %543 = vmatmul.mubr.bf16.gmra.mrb[0].mxu0 %v452
    %v544 = vpop.f32.mrb[0].mxu0
    %v545 = vadd.f32 0.0, %v544
    %v546 = vpop.f32.mrb[0].mxu0
    %v547 = vpop.f32.mrb[0].mxu0
    %v548 = vadd.f32 0.0, %v547
    %v549 = vpop.f32.mrb[0].mxu0
    %550 = vmatprep.mubr.bf16.mxu0 0
    %551 = vmatmul.mubr.bf16.gmra.mrb[0].mxu0 %v453
    %v552 = vpop.f32.mrb[0].mxu0
    %v553 = vadd.f32 0.0, %v552
    %v554 = vpop.f32.mrb[0].mxu0
    %v555 = vpop.f32.mrb[0].mxu0
    %v556 = vadd.f32 0.0, %v555
    %v557 = vpop.f32.mrb[0].mxu0
    %558 = vdwg.mxu0
    %v559 = vpack.c.bf16 %v500, %v497
    %v560 = vpack.c.bf16 %v508, %v505
    %v561 = vpack.c.bf16 %v516, %v513
    %v562 = vpack.c.bf16 %v524, %v521
    %v563 = vpack.c.bf16 %v532, %v529
    %v564 = vpack.c.bf16 %v540, %v537
    %v565 = vpack.c.bf16 %v548, %v545
    %v566 = vpack.c.bf16 %v556, %v553
    %v567 = vld [vmem:[#allocation8] sm:$0xf]
    %v568 = vld [vmem:[#allocation8 + $0x4] sm:$0xf]
    %v569 = vld [vmem:[#allocation8 + $0x8] sm:$0xf]
    %v570 = vld [vmem:[#allocation8 + $0xc] sm:$0xf]
    %v571 = vld [vmem:[#allocation8 + $0x10] sm:$0xf]
    %v572 = vld [vmem:[#allocation8 + $0x14] sm:$0xf]
    %v573 = vld [vmem:[#allocation8 + $0x18] sm:$0xf]
    %v574 = vld [vmem:[#allocation8 + $0x1c] sm:$0xf]
    %v575 = vld [vmem:[#allocation8 + $0x20] sm:$0xf]
    %v576 = vld [vmem:[#allocation8 + $0x24] sm:$0xf]
    %v577 = vld [vmem:[#allocation8 + $0x28] sm:$0xf]
    %v578 = vld [vmem:[#allocation8 + $0x2c] sm:$0xf]
    %v579 = vld [vmem:[#allocation8 + $0x30] sm:$0xf]
    %v580 = vld [vmem:[#allocation8 + $0x34] sm:$0xf]
    %v581 = vld [vmem:[#allocation8 + $0x38] sm:$0xf]
    %v582 = vld [vmem:[#allocation8 + $0x3c] sm:$0xf]
    %v599 = vunpack.c.l.b16 %v567
    %v600 = vunpack.c.l.b16 %v568
    %v601 = vunpack.c.l.b16 %v569
    %v602 = vunpack.c.l.b16 %v570
    %v603 = vunpack.c.l.b16 %v571
    %v604 = vunpack.c.l.b16 %v572
    %v605 = vunpack.c.l.b16 %v573
    %v606 = vunpack.c.l.b16 %v574
    %v607 = vunpack.c.l.b16 %v575
    %v608 = vunpack.c.l.b16 %v576
    %v609 = vunpack.c.l.b16 %v577
    %v610 = vunpack.c.l.b16 %v578
    %v611 = vunpack.c.l.b16 %v579
    %v612 = vunpack.c.l.b16 %v580
    %v613 = vunpack.c.l.b16 %v581
    %v614 = vunpack.c.l.b16 %v582
    %v615 = vpack.c.b16 %v600, %v599
    %v616 = vpack.c.b16 %v602, %v601
    %v617 = vpack.c.b16 %v604, %v603
    %v618 = vpack.c.b16 %v606, %v605
    %v619 = vpack.c.b16 %v608, %v607
    %v620 = vpack.c.b16 %v610, %v609
    %v621 = vpack.c.b16 %v612, %v611
    %v622 = vpack.c.b16 %v614, %v613
    %631 = vmatprep.subr.bf16.mxu0 0
    %632 = vmatpush1.bf16.msra.mxu0 %v615
    %633 = vmatprep.subr.bf16.mxu0 0
    %634 = vmatpush1.bf16.msra.mxu0 %v616
    %635 = vmatprep.subr.bf16.mxu0 0
    %636 = vmatpush1.bf16.msra.mxu0 %v617
    %637 = vmatprep.subr.bf16.mxu0 0
    %638 = vmatpush1.bf16.msra.mxu0 %v618
    %639 = vmatprep.subr.bf16.mxu0 0
    %640 = vmatpush1.bf16.msra.mxu0 %v619
    %641 = vmatprep.subr.bf16.mxu0 0
    %642 = vmatpush1.bf16.msra.mxu0 %v620
    %643 = vmatprep.subr.bf16.mxu0 0
    %644 = vmatpush1.bf16.msra.mxu0 %v621
    %645 = vmatprep.subr.bf16.mxu0 0
    %646 = vmatpush1.bf16.msra.mxu0 %v622
    %647 = vmatprep.subr.bf16.mxu0 0
    %648 = vmatpush1.bf16.msra.mxu0 0
    %649 = vmatprep.subr.bf16.mxu0 0
    %650 = vmatpush1.bf16.msra.mxu0 0
    %651 = vmatprep.subr.bf16.mxu0 0
    %652 = vmatpush1.bf16.msra.mxu0 0
    %653 = vmatprep.subr.bf16.mxu0 0
    %654 = vmatpush1.bf16.msra.mxu0 0
    %655 = vmatprep.subr.bf16.mxu0 0
    %656 = vmatpush1.bf16.msra.mxu0 0
    %657 = vmatprep.subr.bf16.mxu0 0
    %658 = vmatpush1.bf16.msra.mxu0 0
    %659 = vmatprep.subr.bf16.mxu0 0
    %660 = vmatpush1.bf16.msra.mxu0 0
    %661 = vmatprep.subr.bf16.mxu0 0
    %662 = vmatpush1.bf16.msra.mxu0 0
    %663 = vmatprep.mubr.bf16.mxu0 0
    %664 = vmatmul.mubr.bf16.gmra.mrb[0].mxu0 %v559
    %v665 = vpop.f32.mrb[0].mxu0
    %v666 = vadd.f32 %v293, %v665
    %v667 = vpop.f32.mrb[0].mxu0
    %v668 = vpop.f32.mrb[0].mxu0
    %v669 = vadd.f32 %v297, %v668
    %v670 = vpop.f32.mrb[0].mxu0
    %671 = vmatprep.mubr.bf16.mxu0 0
    %672 = vmatmul.mubr.bf16.gmra.mrb[0].mxu0 %v560
    %v673 = vpop.f32.mrb[0].mxu0
    %v674 = vadd.f32 %v303, %v673
    %v675 = vpop.f32.mrb[0].mxu0
    %v676 = vpop.f32.mrb[0].mxu0
    %v677 = vadd.f32 %v307, %v676
    %v678 = vpop.f32.mrb[0].mxu0
    %679 = vmatprep.mubr.bf16.mxu0 0
    %680 = vmatmul.mubr.bf16.gmra.mrb[0].mxu0 %v561
    %v681 = vpop.f32.mrb[0].mxu0
    %v682 = vadd.f32 %v313, %v681
    %v683 = vpop.f32.mrb[0].mxu0
    %v684 = vpop.f32.mrb[0].mxu0
    %v685 = vadd.f32 %v317, %v684
    %v686 = vpop.f32.mrb[0].mxu0
    %687 = vmatprep.mubr.bf16.mxu0 0
    %688 = vmatmul.mubr.bf16.gmra.mrb[0].mxu0 %v562
    %v689 = vpop.f32.mrb[0].mxu0
    %v690 = vadd.f32 %v323, %v689
    %v691 = vpop.f32.mrb[0].mxu0
    %v692 = vpop.f32.mrb[0].mxu0
    %v693 = vadd.f32 %v327, %v692
    %v694 = vpop.f32.mrb[0].mxu0
    %695 = vmatprep.mubr.bf16.mxu0 0
    %696 = vmatmul.mubr.bf16.gmra.mrb[0].mxu0 %v563
    %v697 = vpop.f32.mrb[0].mxu0
    %v698 = vadd.f32 %v333, %v697
    %v699 = vpop.f32.mrb[0].mxu0
    %v700 = vpop.f32.mrb[0].mxu0
    %v701 = vadd.f32 %v337, %v700
    %v702 = vpop.f32.mrb[0].mxu0
    %703 = vmatprep.mubr.bf16.mxu0 0
    %704 = vmatmul.mubr.bf16.gmra.mrb[0].mxu0 %v564
    %v705 = vpop.f32.mrb[0].mxu0
    %v706 = vadd.f32 %v343, %v705
    %v707 = vpop.f32.mrb[0].mxu0
    %v708 = vpop.f32.mrb[0].mxu0
    %v709 = vadd.f32 %v347, %v708
    %v710 = vpop.f32.mrb[0].mxu0
    %711 = vmatprep.mubr.bf16.mxu0 0
    %712 = vmatmul.mubr.bf16.gmra.mrb[0].mxu0 %v565
    %v713 = vpop.f32.mrb[0].mxu0
    %v714 = vadd.f32 %v353, %v713
    %v715 = vpop.f32.mrb[0].mxu0
    %v716 = vpop.f32.mrb[0].mxu0
    %v717 = vadd.f32 %v357, %v716
    %v718 = vpop.f32.mrb[0].mxu0
    %719 = vmatprep.mubr.bf16.mxu0 0
    %720 = vmatmul.mubr.bf16.gmra.mrb[0].mxu0 %v566
    %v721 = vpop.f32.mrb[0].mxu0
    %v722 = vadd.f32 %v363, %v721
    %v723 = vpop.f32.mrb[0].mxu0
    %v724 = vpop.f32.mrb[0].mxu0
    %v725 = vadd.f32 %v367, %v724
    %v726 = vpop.f32.mrb[0].mxu0
    %727 = vdwg.mxu0
    %v728 = vld [vmem:[%s4 + $0x1] sm:$0x1]
    %v729 = vlaneseq
    %v730 = vshrl.u32 %v729, 7
    %v731 = vsub.s32 0, %v730
    %v732 = vrot.slane %v728, %v731
    %v733 = vadd.f32 %v666, %v732
    %v734 = vadd.f32 %v669, %v732
    %v735 = vadd.f32 %v674, %v732
    %v736 = vadd.f32 %v677, %v732
    %v737 = vadd.f32 %v682, %v732
    %v738 = vadd.f32 %v685, %v732
    %v739 = vadd.f32 %v690, %v732
    %v740 = vadd.f32 %v693, %v732
    %v741 = vadd.f32 %v698, %v732
    %v742 = vadd.f32 %v701, %v732
    %v743 = vadd.f32 %v706, %v732
    %v744 = vadd.f32 %v709, %v732
    %v745 = vadd.f32 %v714, %v732
    %v746 = vadd.f32 %v717, %v732
    %v747 = vadd.f32 %v722, %v732
    %v748 = vadd.f32 %v725, %v732
    %v749 = vmax.f32 %v733, 0.0
    %v750 = vmax.f32 %v734, 0.0
    %v751 = vmax.f32 %v735, 0.0
    %v752 = vmax.f32 %v736, 0.0
    %v753 = vmax.f32 %v737, 0.0
    %v754 = vmax.f32 %v738, 0.0
    %v755 = vmax.f32 %v739, 0.0
    %v756 = vmax.f32 %v740, 0.0
    %v757 = vmax.f32 %v741, 0.0
    %v758 = vmax.f32 %v742, 0.0
    %v759 = vmax.f32 %v743, 0.0
    %v760 = vmax.f32 %v744, 0.0
    %v761 = vmax.f32 %v745, 0.0
    %v762 = vmax.f32 %v746, 0.0
    %v763 = vmax.f32 %v747, 0.0
    %v764 = vmax.f32 %v748, 0.0
    %v765 = vld [vmem:[#allocation10] sm:$0xff]
    %v766 = vld [vmem:[#allocation10 + $0x8] sm:$0xff]
    %v767 = vld [vmem:[#allocation10 + $0x10] sm:$0xff]
    %v768 = vld [vmem:[#allocation10 + $0x18] sm:$0xff]
    %v769 = vld [vmem:[#allocation10 + $0x20] sm:$0xff]
    %v770 = vld [vmem:[#allocation10 + $0x28] sm:$0xff]
    %v771 = vld [vmem:[#allocation10 + $0x30] sm:$0xff]
    %v772 = vld [vmem:[#allocation10 + $0x38] sm:$0xff]
    %v773 = vld [vmem:[#allocation10 + $0x40] sm:$0xff]
    %v774 = vld [vmem:[#allocation10 + $0x48] sm:$0xff]
    %v775 = vld [vmem:[#allocation10 + $0x50] sm:$0xff]
    %v776 = vld [vmem:[#allocation10 + $0x58] sm:$0xff]
    %v777 = vld [vmem:[#allocation10 + $0x60] sm:$0xff]
    %v778 = vld [vmem:[#allocation10 + $0x68] sm:$0xff]
    %v779 = vld [vmem:[#allocation10 + $0x70] sm:$0xff]
    %v780 = vld [vmem:[#allocation10 + $0x78] sm:$0xff]
    %v781 = vmul.f32 %v749, %v765
    %v782 = vmul.f32 %v750, %v766
    %v783 = vmul.f32 %v751, %v767
    %v784 = vmul.f32 %v752, %v768
    %v785 = vmul.f32 %v753, %v769
    %v786 = vmul.f32 %v754, %v770
    %v787 = vmul.f32 %v755, %v771
    %v788 = vmul.f32 %v756, %v772
    %v789 = vmul.f32 %v757, %v773
    %v790 = vmul.f32 %v758, %v774
    %v791 = vmul.f32 %v759, %v775
    %v792 = vmul.f32 %v760, %v776
    %v793 = vmul.f32 %v761, %v777
    %v794 = vmul.f32 %v762, %v778
    %v795 = vmul.f32 %v763, %v779
    %v796 = vmul.f32 %v764, %v780
    %v797 = vpack.c.bf16 %v782, %v781
    %v798 = vpack.c.bf16 %v784, %v783
    %v799 = vpack.c.bf16 %v786, %v785
    %v800 = vpack.c.bf16 %v788, %v787
    %v801 = vpack.c.bf16 %v790, %v789
    %v802 = vpack.c.bf16 %v792, %v791
    %v803 = vpack.c.bf16 %v794, %v793
    %v804 = vpack.c.bf16 %v796, %v795
    %s805 = scalar_lea.vmem [#allocation7], 128
    %v806 = vld [vmem:[%s805] sm:$0xff]
    %v807 = vld [vmem:[%s805 + $0x8] sm:$0xff]
    %v808 = vld [vmem:[%s805 + $0x10] sm:$0xff]
    %v809 = vld [vmem:[%s805 + $0x18] sm:$0xff]
    %v810 = vld [vmem:[%s805 + $0x20] sm:$0xff]
    %v811 = vld [vmem:[%s805 + $0x28] sm:$0xff]
    %v812 = vld [vmem:[%s805 + $0x30] sm:$0xff]
    %v813 = vld [vmem:[%s805 + $0x38] sm:$0xff]
    %v814 = vld [vmem:[%s805 + $0x40] sm:$0xff]
    %v815 = vld [vmem:[%s805 + $0x48] sm:$0xff]
    %v816 = vld [vmem:[%s805 + $0x50] sm:$0xff]
    %v817 = vld [vmem:[%s805 + $0x58] sm:$0xff]
    %v818 = vld [vmem:[%s805 + $0x60] sm:$0xff]
    %v819 = vld [vmem:[%s805 + $0x68] sm:$0xff]
    %v820 = vld [vmem:[%s805 + $0x70] sm:$0xff]
    %v821 = vld [vmem:[%s805 + $0x78] sm:$0xff]
    %v838 = vunpack.c.l.b16 %v806
    %v839 = vunpack.c.h.b16 %v806
    %v840 = vunpack.c.l.b16 %v807
    %v841 = vunpack.c.h.b16 %v807
    %v842 = vunpack.c.l.b16 %v808
    %v843 = vunpack.c.h.b16 %v808
    %v844 = vunpack.c.l.b16 %v809
    %v845 = vunpack.c.h.b16 %v809
    %v846 = vunpack.c.l.b16 %v810
    %v847 = vunpack.c.h.b16 %v810
    %v848 = vunpack.c.l.b16 %v811
    %v849 = vunpack.c.h.b16 %v811
    %v850 = vunpack.c.l.b16 %v812
    %v851 = vunpack.c.h.b16 %v812
    %v852 = vunpack.c.l.b16 %v813
    %v853 = vunpack.c.h.b16 %v813
    %v854 = vunpack.c.l.b16 %v814
    %v855 = vunpack.c.h.b16 %v814
    %v856 = vunpack.c.l.b16 %v815
    %v857 = vunpack.c.h.b16 %v815
    %v858 = vunpack.c.l.b16 %v816
    %v859 = vunpack.c.h.b16 %v816
    %v860 = vunpack.c.l.b16 %v817
    %v861 = vunpack.c.h.b16 %v817
    %v862 = vunpack.c.l.b16 %v818
    %v863 = vunpack.c.h.b16 %v818
    %v864 = vunpack.c.l.b16 %v819
    %v865 = vunpack.c.h.b16 %v819
    %v866 = vunpack.c.l.b16 %v820
    %v867 = vunpack.c.h.b16 %v820
    %v868 = vunpack.c.l.b16 %v821
    %v869 = vunpack.c.h.b16 %v821
    %v870 = vpack.c.b16 %v840, %v838
    %v871 = vpack.c.b16 %v841, %v839
    %v872 = vpack.c.b16 %v844, %v842
    %v873 = vpack.c.b16 %v845, %v843
    %v874 = vpack.c.b16 %v848, %v846
    %v875 = vpack.c.b16 %v849, %v847
    %v876 = vpack.c.b16 %v852, %v850
    %v877 = vpack.c.b16 %v853, %v851
    %v878 = vpack.c.b16 %v856, %v854
    %v879 = vpack.c.b16 %v857, %v855
    %v880 = vpack.c.b16 %v860, %v858
    %v881 = vpack.c.b16 %v861, %v859
    %v882 = vpack.c.b16 %v864, %v862
    %v883 = vpack.c.b16 %v865, %v863
    %v884 = vpack.c.b16 %v868, %v866
    %v885 = vpack.c.b16 %v869, %v867
    %902 = vmatprep.subr.bf16.mxu0 %v871
    %903 = vmatpush1.bf16.msra.mxu0 %v870
    %904 = vmatprep.subr.bf16.mxu0 %v873
    %905 = vmatpush1.bf16.msra.mxu0 %v872
    %906 = vmatprep.subr.bf16.mxu0 %v875
    %907 = vmatpush1.bf16.msra.mxu0 %v874
    %908 = vmatprep.subr.bf16.mxu0 %v877
    %909 = vmatpush1.bf16.msra.mxu0 %v876
    %910 = vmatprep.subr.bf16.mxu0 %v879
    %911 = vmatpush1.bf16.msra.mxu0 %v878
    %912 = vmatprep.subr.bf16.mxu0 %v881
    %913 = vmatpush1.bf16.msra.mxu0 %v880
    %914 = vmatprep.subr.bf16.mxu0 %v883
    %915 = vmatpush1.bf16.msra.mxu0 %v882
    %916 = vmatprep.subr.bf16.mxu0 %v885
    %917 = vmatpush1.bf16.msra.mxu0 %v884
    %918 = vmatprep.subr.bf16.mxu0 0
    %919 = vmatpush1.bf16.msra.mxu0 0
    %920 = vmatprep.subr.bf16.mxu0 0
    %921 = vmatpush1.bf16.msra.mxu0 0
    %922 = vmatprep.subr.bf16.mxu0 0
    %923 = vmatpush1.bf16.msra.mxu0 0
    %924 = vmatprep.subr.bf16.mxu0 0
    %925 = vmatpush1.bf16.msra.mxu0 0
    %926 = vmatprep.subr.bf16.mxu0 0
    %927 = vmatpush1.bf16.msra.mxu0 0
    %928 = vmatprep.subr.bf16.mxu0 0
    %929 = vmatpush1.bf16.msra.mxu0 0
    %930 = vmatprep.subr.bf16.mxu0 0
    %931 = vmatpush1.bf16.msra.mxu0 0
    %932 = vmatprep.subr.bf16.mxu0 0
    %933 = vmatpush1.bf16.msra.mxu0 0
    %934 = vmatprep.mubr.bf16.mxu0 0
    %935 = vmatmul.mubr.bf16.gmra.mrb[0].mxu0 %v797
    %v936 = vpop.f32.mrb[0].mxu0
    %v937 = vadd.f32 0.0, %v936
    %v938 = vpop.f32.mrb[0].mxu0
    %v939 = vadd.f32 0.0, %v938
    %v940 = vpop.f32.mrb[0].mxu0
    %v941 = vadd.f32 0.0, %v940
    %v942 = vpop.f32.mrb[0].mxu0
    %v943 = vadd.f32 0.0, %v942
    %944 = vmatprep.mubr.bf16.mxu0 0
    %945 = vmatmul.mubr.bf16.gmra.mrb[0].mxu0 %v798
    %v946 = vpop.f32.mrb[0].mxu0
    %v947 = vadd.f32 0.0, %v946
    %v948 = vpop.f32.mrb[0].mxu0
    %v949 = vadd.f32 0.0, %v948
    %v950 = vpop.f32.mrb[0].mxu0
    %v951 = vadd.f32 0.0, %v950
    %v952 = vpop.f32.mrb[0].mxu0
    %v953 = vadd.f32 0.0, %v952
    %954 = vmatprep.mubr.bf16.mxu0 0
    %955 = vmatmul.mubr.bf16.gmra.mrb[0].mxu0 %v799
    %v956 = vpop.f32.mrb[0].mxu0
    %v957 = vadd.f32 0.0, %v956
    %v958 = vpop.f32.mrb[0].mxu0
    %v959 = vadd.f32 0.0, %v958
    %v960 = vpop.f32.mrb[0].mxu0
    %v961 = vadd.f32 0.0, %v960
    %v962 = vpop.f32.mrb[0].mxu0
    %v963 = vadd.f32 0.0, %v962
    %964 = vmatprep.mubr.bf16.mxu0 0
    %965 = vmatmul.mubr.bf16.gmra.mrb[0].mxu0 %v800
    %v966 = vpop.f32.mrb[0].mxu0
    %v967 = vadd.f32 0.0, %v966
    %v968 = vpop.f32.mrb[0].mxu0
    %v969 = vadd.f32 0.0, %v968
    %v970 = vpop.f32.mrb[0].mxu0
    %v971 = vadd.f32 0.0, %v970
    %v972 = vpop.f32.mrb[0].mxu0
    %v973 = vadd.f32 0.0, %v972
    %974 = vmatprep.mubr.bf16.mxu0 0
    %975 = vmatmul.mubr.bf16.gmra.mrb[0].mxu0 %v801
    %v976 = vpop.f32.mrb[0].mxu0
    %v977 = vadd.f32 0.0, %v976
    %v978 = vpop.f32.mrb[0].mxu0
    %v979 = vadd.f32 0.0, %v978
    %v980 = vpop.f32.mrb[0].mxu0
    %v981 = vadd.f32 0.0, %v980
    %v982 = vpop.f32.mrb[0].mxu0
    %v983 = vadd.f32 0.0, %v982
    %984 = vmatprep.mubr.bf16.mxu0 0
    %985 = vmatmul.mubr.bf16.gmra.mrb[0].mxu0 %v802
    %v986 = vpop.f32.mrb[0].mxu0
    %v987 = vadd.f32 0.0, %v986
    %v988 = vpop.f32.mrb[0].mxu0
    %v989 = vadd.f32 0.0, %v988
    %v990 = vpop.f32.mrb[0].mxu0
    %v991 = vadd.f32 0.0, %v990
    %v992 = vpop.f32.mrb[0].mxu0
    %v993 = vadd.f32 0.0, %v992
    %994 = vmatprep.mubr.bf16.mxu0 0
    %995 = vmatmul.mubr.bf16.gmra.mrb[0].mxu0 %v803
    %v996 = vpop.f32.mrb[0].mxu0
    %v997 = vadd.f32 0.0, %v996
    %v998 = vpop.f32.mrb[0].mxu0
    %v999 = vadd.f32 0.0, %v998
    %v1000 = vpop.f32.mrb[0].mxu0
    %v1001 = vadd.f32 0.0, %v1000
    %v1002 = vpop.f32.mrb[0].mxu0
    %v1003 = vadd.f32 0.0, %v1002
    %1004 = vmatprep.mubr.bf16.mxu0 0
    %1005 = vmatmul.mubr.bf16.gmra.mrb[0].mxu0 %v804
    %v1006 = vpop.f32.mrb[0].mxu0
    %v1007 = vadd.f32 0.0, %v1006
    %v1008 = vpop.f32.mrb[0].mxu0
    %v1009 = vadd.f32 0.0, %v1008
    %v1010 = vpop.f32.mrb[0].mxu0
    %v1011 = vadd.f32 0.0, %v1010
    %v1012 = vpop.f32.mrb[0].mxu0
    %v1013 = vadd.f32 0.0, %v1012
    %1014 = vdwg.mxu0
    %v1015 = vld [vmem:[%s4 + $0x2] sm:$0x1]
    %v1016 = vlaneseq
    %v1017 = vshrl.u32 %v1016, 7
    %v1018 = vsub.s32 0, %v1017
    %v1019 = vrot.slane %v1015, %v1018
    %v1020 = vadd.f32 %v937, %v1019
    %v1021 = vadd.f32 %v941, %v1019
    %v1022 = vadd.f32 %v947, %v1019
    %v1023 = vadd.f32 %v951, %v1019
    %v1024 = vadd.f32 %v957, %v1019
    %v1025 = vadd.f32 %v961, %v1019
    %v1026 = vadd.f32 %v967, %v1019
    %v1027 = vadd.f32 %v971, %v1019
    %v1028 = vadd.f32 %v977, %v1019
    %v1029 = vadd.f32 %v981, %v1019
    %v1030 = vadd.f32 %v987, %v1019
    %v1031 = vadd.f32 %v991, %v1019
    %v1032 = vadd.f32 %v997, %v1019
    %v1033 = vadd.f32 %v1001, %v1019
    %v1034 = vadd.f32 %v1007, %v1019
    %v1035 = vadd.f32 %v1011, %v1019
    %v1036 = vpack.c.bf16 %v1021, %v1020
    %v1037 = vpack.c.bf16 %v1023, %v1022
    %v1038 = vpack.c.bf16 %v1025, %v1024
    %v1039 = vpack.c.bf16 %v1027, %v1026
    %v1040 = vpack.c.bf16 %v1029, %v1028
    %v1041 = vpack.c.bf16 %v1031, %v1030
    %v1042 = vpack.c.bf16 %v1033, %v1032
    %v1043 = vpack.c.bf16 %v1035, %v1034
    %1044 = vmatprep.subr.bf16.mxu0 0
    %1045 = vmatpush1.bf16.msra.mxu0 %v1036
    %1046 = vmatprep.subr.bf16.mxu0 0
    %1047 = vmatpush1.bf16.msra.mxu0 %v1037
    %1048 = vmatprep.subr.bf16.mxu0 0
    %1049 = vmatpush1.bf16.msra.mxu0 %v1038
    %1050 = vmatprep.subr.bf16.mxu0 0
    %1051 = vmatpush1.bf16.msra.mxu0 %v1039
    %1052 = vmatprep.subr.bf16.mxu0 0
    %1053 = vmatpush1.bf16.msra.mxu0 %v1040
    %1054 = vmatprep.subr.bf16.mxu0 0
    %1055 = vmatpush1.bf16.msra.mxu0 %v1041
    %1056 = vmatprep.subr.bf16.mxu0 0
    %1057 = vmatpush1.bf16.msra.mxu0 %v1042
    %1058 = vmatprep.subr.bf16.mxu0 0
    %1059 = vmatpush1.bf16.msra.mxu0 %v1043
    %1060 = vmatprep.subr.bf16.mxu0 0
    %1061 = vmatpush1.bf16.msra.mxu0 0
    %1062 = vmatprep.subr.bf16.mxu0 0
    %1063 = vmatpush1.bf16.msra.mxu0 0
    %1064 = vmatprep.subr.bf16.mxu0 0
    %1065 = vmatpush1.bf16.msra.mxu0 0
    %1066 = vmatprep.subr.bf16.mxu0 0
    %1067 = vmatpush1.bf16.msra.mxu0 0
    %1068 = vmatprep.subr.bf16.mxu0 0
    %1069 = vmatpush1.bf16.msra.mxu0 0
    %1070 = vmatprep.subr.bf16.mxu0 0
    %1071 = vmatpush1.bf16.msra.mxu0 0
    %1072 = vmatprep.subr.bf16.mxu0 0
    %1073 = vmatpush1.bf16.msra.mxu0 0
    %1074 = vmatprep.subr.bf16.mxu0 0
    %1075 = vmatpush1.bf16.msra.mxu0 0
    %1076 = vmatprep.mubr.bf16.mxu0 0
    %1077 = vmatmul.mubr.bf16.gmra.mrb[0].mxu0 %v446
    %v1078 = vpop.f32.mrb[0].mxu0
    %v1079 = vadd.f32 0.0, %v1078
    %v1080 = vpop.f32.mrb[0].mxu0
    %v1081 = vpop.f32.mrb[0].mxu0
    %v1082 = vadd.f32 0.0, %v1081
    %v1083 = vpop.f32.mrb[0].mxu0
    %1084 = vmatprep.mubr.bf16.mxu0 0
    %1085 = vmatmul.mubr.bf16.gmra.mrb[0].mxu0 %v447
    %v1086 = vpop.f32.mrb[0].mxu0
    %v1087 = vadd.f32 0.0, %v1086
    %v1088 = vpop.f32.mrb[0].mxu0
    %v1089 = vpop.f32.mrb[0].mxu0
    %v1090 = vadd.f32 0.0, %v1089
    %v1091 = vpop.f32.mrb[0].mxu0
    %1092 = vmatprep.mubr.bf16.mxu0 0
    %1093 = vmatmul.mubr.bf16.gmra.mrb[0].mxu0 %v448
    %v1094 = vpop.f32.mrb[0].mxu0
    %v1095 = vadd.f32 0.0, %v1094
    %v1096 = vpop.f32.mrb[0].mxu0
    %v1097 = vpop.f32.mrb[0].mxu0
    %v1098 = vadd.f32 0.0, %v1097
    %v1099 = vpop.f32.mrb[0].mxu0
    %1100 = vmatprep.mubr.bf16.mxu0 0
    %1101 = vmatmul.mubr.bf16.gmra.mrb[0].mxu0 %v449
    %v1102 = vpop.f32.mrb[0].mxu0
    %v1103 = vadd.f32 0.0, %v1102
    %v1104 = vpop.f32.mrb[0].mxu0
    %v1105 = vpop.f32.mrb[0].mxu0
    %v1106 = vadd.f32 0.0, %v1105
    %v1107 = vpop.f32.mrb[0].mxu0
    %1108 = vmatprep.mubr.bf16.mxu0 0
    %1109 = vmatmul.mubr.bf16.gmra.mrb[0].mxu0 %v450
    %v1110 = vpop.f32.mrb[0].mxu0
    %v1111 = vadd.f32 0.0, %v1110
    %v1112 = vpop.f32.mrb[0].mxu0
    %v1113 = vpop.f32.mrb[0].mxu0
    %v1114 = vadd.f32 0.0, %v1113
    %v1115 = vpop.f32.mrb[0].mxu0
    %1116 = vmatprep.mubr.bf16.mxu0 0
    %1117 = vmatmul.mubr.bf16.gmra.mrb[0].mxu0 %v451
    %v1118 = vpop.f32.mrb[0].mxu0
    %v1119 = vadd.f32 0.0, %v1118
    %v1120 = vpop.f32.mrb[0].mxu0
    %v1121 = vpop.f32.mrb[0].mxu0
    %v1122 = vadd.f32 0.0, %v1121
    %v1123 = vpop.f32.mrb[0].mxu0
    %1124 = vmatprep.mubr.bf16.mxu0 0
    %1125 = vmatmul.mubr.bf16.gmra.mrb[0].mxu0 %v452
    %v1126 = vpop.f32.mrb[0].mxu0
    %v1127 = vadd.f32 0.0, %v1126
    %v1128 = vpop.f32.mrb[0].mxu0
    %v1129 = vpop.f32.mrb[0].mxu0
    %v1130 = vadd.f32 0.0, %v1129
    %v1131 = vpop.f32.mrb[0].mxu0
    %1132 = vmatprep.mubr.bf16.mxu0 0
    %1133 = vmatmul.mubr.bf16.gmra.mrb[0].mxu0 %v453
    %v1134 = vpop.f32.mrb[0].mxu0
    %v1135 = vadd.f32 0.0, %v1134
    %v1136 = vpop.f32.mrb[0].mxu0
    %v1137 = vpop.f32.mrb[0].mxu0
    %v1138 = vadd.f32 0.0, %v1137
    %v1139 = vpop.f32.mrb[0].mxu0
    %1140 = vdwg.mxu0
    %v1141 = vpack.c.bf16 %v1082, %v1079
    %v1142 = vpack.c.bf16 %v1090, %v1087
    %v1143 = vpack.c.bf16 %v1098, %v1095
    %v1144 = vpack.c.bf16 %v1106, %v1103
    %v1145 = vpack.c.bf16 %v1114, %v1111
    %v1146 = vpack.c.bf16 %v1122, %v1119
    %v1147 = vpack.c.bf16 %v1130, %v1127
    %v1148 = vpack.c.bf16 %v1138, %v1135
    %s1149 = scalar_lea.vmem [#allocation8], 64
    %v1150 = vld [vmem:[%s1149] sm:$0xf]
    %v1151 = vld [vmem:[%s1149 + $0x4] sm:$0xf]
    %v1152 = vld [vmem:[%s1149 + $0x8] sm:$0xf]
    %v1153 = vld [vmem:[%s1149 + $0xc] sm:$0xf]
    %v1154 = vld [vmem:[%s1149 + $0x10] sm:$0xf]
    %v1155 = vld [vmem:[%s1149 + $0x14] sm:$0xf]
    %v1156 = vld [vmem:[%s1149 + $0x18] sm:$0xf]
    %v1157 = vld [vmem:[%s1149 + $0x1c] sm:$0xf]
    %v1158 = vld [vmem:[%s1149 + $0x20] sm:$0xf]
    %v1159 = vld [vmem:[%s1149 + $0x24] sm:$0xf]
    %v1160 = vld [vmem:[%s1149 + $0x28] sm:$0xf]
    %v1161 = vld [vmem:[%s1149 + $0x2c] sm:$0xf]
    %v1162 = vld [vmem:[%s1149 + $0x30] sm:$0xf]
    %v1163 = vld [vmem:[%s1149 + $0x34] sm:$0xf]
    %v1164 = vld [vmem:[%s1149 + $0x38] sm:$0xf]
    %v1165 = vld [vmem:[%s1149 + $0x3c] sm:$0xf]
    %v1182 = vunpack.c.l.b16 %v1150
    %v1183 = vunpack.c.l.b16 %v1151
    %v1184 = vunpack.c.l.b16 %v1152
    %v1185 = vunpack.c.l.b16 %v1153
    %v1186 = vunpack.c.l.b16 %v1154
    %v1187 = vunpack.c.l.b16 %v1155
    %v1188 = vunpack.c.l.b16 %v1156
    %v1189 = vunpack.c.l.b16 %v1157
    %v1190 = vunpack.c.l.b16 %v1158
    %v1191 = vunpack.c.l.b16 %v1159
    %v1192 = vunpack.c.l.b16 %v1160
    %v1193 = vunpack.c.l.b16 %v1161
    %v1194 = vunpack.c.l.b16 %v1162
    %v1195 = vunpack.c.l.b16 %v1163
    %v1196 = vunpack.c.l.b16 %v1164
    %v1197 = vunpack.c.l.b16 %v1165
    %v1198 = vpack.c.b16 %v1183, %v1182
    %v1199 = vpack.c.b16 %v1185, %v1184
    %v1200 = vpack.c.b16 %v1187, %v1186
    %v1201 = vpack.c.b16 %v1189, %v1188
    %v1202 = vpack.c.b16 %v1191, %v1190
    %v1203 = vpack.c.b16 %v1193, %v1192
    %v1204 = vpack.c.b16 %v1195, %v1194
    %v1205 = vpack.c.b16 %v1197, %v1196
    %1214 = vmatprep.subr.bf16.mxu0 0
    %1215 = vmatpush1.bf16.msra.mxu0 %v1198
    %1216 = vmatprep.subr.bf16.mxu0 0
    %1217 = vmatpush1.bf16.msra.mxu0 %v1199
    %1218 = vmatprep.subr.bf16.mxu0 0
    %1219 = vmatpush1.bf16.msra.mxu0 %v1200
    %1220 = vmatprep.subr.bf16.mxu0 0
    %1221 = vmatpush1.bf16.msra.mxu0 %v1201
    %1222 = vmatprep.subr.bf16.mxu0 0
    %1223 = vmatpush1.bf16.msra.mxu0 %v1202
    %1224 = vmatprep.subr.bf16.mxu0 0
    %1225 = vmatpush1.bf16.msra.mxu0 %v1203
    %1226 = vmatprep.subr.bf16.mxu0 0
    %1227 = vmatpush1.bf16.msra.mxu0 %v1204
    %1228 = vmatprep.subr.bf16.mxu0 0
    %1229 = vmatpush1.bf16.msra.mxu0 %v1205
    %1230 = vmatprep.subr.bf16.mxu0 0
    %1231 = vmatpush1.bf16.msra.mxu0 0
    %1232 = vmatprep.subr.bf16.mxu0 0
    %1233 = vmatpush1.bf16.msra.mxu0 0
    %1234 = vmatprep.subr.bf16.mxu0 0
    %1235 = vmatpush1.bf16.msra.mxu0 0
    %1236 = vmatprep.subr.bf16.mxu0 0
    %1237 = vmatpush1.bf16.msra.mxu0 0
    %1238 = vmatprep.subr.bf16.mxu0 0
    %1239 = vmatpush1.bf16.msra.mxu0 0
    %1240 = vmatprep.subr.bf16.mxu0 0
    %1241 = vmatpush1.bf16.msra.mxu0 0
    %1242 = vmatprep.subr.bf16.mxu0 0
    %1243 = vmatpush1.bf16.msra.mxu0 0
    %1244 = vmatprep.subr.bf16.mxu0 0
    %1245 = vmatpush1.bf16.msra.mxu0 0
    %1246 = vmatprep.mubr.bf16.mxu0 0
    %1247 = vmatmul.mubr.bf16.gmra.mrb[0].mxu0 %v1141
    %v1248 = vpop.f32.mrb[0].mxu0
    %v1249 = vadd.f32 %v939, %v1248
    %v1250 = vpop.f32.mrb[0].mxu0
    %v1251 = vpop.f32.mrb[0].mxu0
    %v1252 = vadd.f32 %v943, %v1251
    %v1253 = vpop.f32.mrb[0].mxu0
    %1254 = vmatprep.mubr.bf16.mxu0 0
    %1255 = vmatmul.mubr.bf16.gmra.mrb[0].mxu0 %v1142
    %v1256 = vpop.f32.mrb[0].mxu0
    %v1257 = vadd.f32 %v949, %v1256
    %v1258 = vpop.f32.mrb[0].mxu0
    %v1259 = vpop.f32.mrb[0].mxu0
    %v1260 = vadd.f32 %v953, %v1259
    %v1261 = vpop.f32.mrb[0].mxu0
    %1262 = vmatprep.mubr.bf16.mxu0 0
    %1263 = vmatmul.mubr.bf16.gmra.mrb[0].mxu0 %v1143
    %v1264 = vpop.f32.mrb[0].mxu0
    %v1265 = vadd.f32 %v959, %v1264
    %v1266 = vpop.f32.mrb[0].mxu0
    %v1267 = vpop.f32.mrb[0].mxu0
    %v1268 = vadd.f32 %v963, %v1267
    %v1269 = vpop.f32.mrb[0].mxu0
    %1270 = vmatprep.mubr.bf16.mxu0 0
    %1271 = vmatmul.mubr.bf16.gmra.mrb[0].mxu0 %v1144
    %v1272 = vpop.f32.mrb[0].mxu0
    %v1273 = vadd.f32 %v969, %v1272
    %v1274 = vpop.f32.mrb[0].mxu0
    %v1275 = vpop.f32.mrb[0].mxu0
    %v1276 = vadd.f32 %v973, %v1275
    %v1277 = vpop.f32.mrb[0].mxu0
    %1278 = vmatprep.mubr.bf16.mxu0 0
    %1279 = vmatmul.mubr.bf16.gmra.mrb[0].mxu0 %v1145
    %v1280 = vpop.f32.mrb[0].mxu0
    %v1281 = vadd.f32 %v979, %v1280
    %v1282 = vpop.f32.mrb[0].mxu0
    %v1283 = vpop.f32.mrb[0].mxu0
    %v1284 = vadd.f32 %v983, %v1283
    %v1285 = vpop.f32.mrb[0].mxu0
    %1286 = vmatprep.mubr.bf16.mxu0 0
    %1287 = vmatmul.mubr.bf16.gmra.mrb[0].mxu0 %v1146
    %v1288 = vpop.f32.mrb[0].mxu0
    %v1289 = vadd.f32 %v989, %v1288
    %v1290 = vpop.f32.mrb[0].mxu0
    %v1291 = vpop.f32.mrb[0].mxu0
    %v1292 = vadd.f32 %v993, %v1291
    %v1293 = vpop.f32.mrb[0].mxu0
    %1294 = vmatprep.mubr.bf16.mxu0 0
    %1295 = vmatmul.mubr.bf16.gmra.mrb[0].mxu0 %v1147
    %v1296 = vpop.f32.mrb[0].mxu0
    %v1297 = vadd.f32 %v999, %v1296
    %v1298 = vpop.f32.mrb[0].mxu0
    %v1299 = vpop.f32.mrb[0].mxu0
    %v1300 = vadd.f32 %v1003, %v1299
    %v1301 = vpop.f32.mrb[0].mxu0
    %1302 = vmatprep.mubr.bf16.mxu0 0
    %1303 = vmatmul.mubr.bf16.gmra.mrb[0].mxu0 %v1148
    %v1304 = vpop.f32.mrb[0].mxu0
    %v1305 = vadd.f32 %v1009, %v1304
    %v1306 = vpop.f32.mrb[0].mxu0
    %v1307 = vpop.f32.mrb[0].mxu0
    %v1308 = vadd.f32 %v1013, %v1307
    %v1309 = vpop.f32.mrb[0].mxu0
    %1310 = vdwg.mxu0
    %v1311 = vld [vmem:[%s4 + $0x3] sm:$0x1]
    %v1312 = vlaneseq
    %v1313 = vshrl.u32 %v1312, 7
    %v1314 = vsub.s32 0, %v1313
    %v1315 = vrot.slane %v1311, %v1314
    %v1316 = vadd.f32 %v1249, %v1315
    %v1317 = vadd.f32 %v1252, %v1315
    %v1318 = vadd.f32 %v1257, %v1315
    %v1319 = vadd.f32 %v1260, %v1315
    %v1320 = vadd.f32 %v1265, %v1315
    %v1321 = vadd.f32 %v1268, %v1315
    %v1322 = vadd.f32 %v1273, %v1315
    %v1323 = vadd.f32 %v1276, %v1315
    %v1324 = vadd.f32 %v1281, %v1315
    %v1325 = vadd.f32 %v1284, %v1315
    %v1326 = vadd.f32 %v1289, %v1315
    %v1327 = vadd.f32 %v1292, %v1315
    %v1328 = vadd.f32 %v1297, %v1315
    %v1329 = vadd.f32 %v1300, %v1315
    %v1330 = vadd.f32 %v1305, %v1315
    %v1331 = vadd.f32 %v1308, %v1315
    %v1332 = vmax.f32 %v1316, 0.0
    %v1333 = vmax.f32 %v1317, 0.0
    %v1334 = vmax.f32 %v1318, 0.0
    %v1335 = vmax.f32 %v1319, 0.0
    %v1336 = vmax.f32 %v1320, 0.0
    %v1337 = vmax.f32 %v1321, 0.0
    %v1338 = vmax.f32 %v1322, 0.0
    %v1339 = vmax.f32 %v1323, 0.0
    %v1340 = vmax.f32 %v1324, 0.0
    %v1341 = vmax.f32 %v1325, 0.0
    %v1342 = vmax.f32 %v1326, 0.0
    %v1343 = vmax.f32 %v1327, 0.0
    %v1344 = vmax.f32 %v1328, 0.0
    %v1345 = vmax.f32 %v1329, 0.0
    %v1346 = vmax.f32 %v1330, 0.0
    %v1347 = vmax.f32 %v1331, 0.0
    %s1348 = scalar_lea.vmem [#allocation10], 128
    %v1349 = vld [vmem:[%s1348] sm:$0xff]
    %v1350 = vld [vmem:[%s1348 + $0x8] sm:$0xff]
    %v1351 = vld [vmem:[%s1348 + $0x10] sm:$0xff]
    %v1352 = vld [vmem:[%s1348 + $0x18] sm:$0xff]
    %v1353 = vld [vmem:[%s1348 + $0x20] sm:$0xff]
    %v1354 = vld [vmem:[%s1348 + $0x28] sm:$0xff]
    %v1355 = vld [vmem:[%s1348 + $0x30] sm:$0xff]
    %v1356 = vld [vmem:[%s1348 + $0x38] sm:$0xff]
    %v1357 = vld [vmem:[%s1348 + $0x40] sm:$0xff]
    %v1358 = vld [vmem:[%s1348 + $0x48] sm:$0xff]
    %v1359 = vld [vmem:[%s1348 + $0x50] sm:$0xff]
    %v1360 = vld [vmem:[%s1348 + $0x58] sm:$0xff]
    %v1361 = vld [vmem:[%s1348 + $0x60] sm:$0xff]
    %v1362 = vld [vmem:[%s1348 + $0x68] sm:$0xff]
    %v1363 = vld [vmem:[%s1348 + $0x70] sm:$0xff]
    %v1364 = vld [vmem:[%s1348 + $0x78] sm:$0xff]
    %v1365 = vmul.f32 %v1332, %v1349
    %v1366 = vmul.f32 %v1333, %v1350
    %v1367 = vmul.f32 %v1334, %v1351
    %v1368 = vmul.f32 %v1335, %v1352
    %v1369 = vmul.f32 %v1336, %v1353
    %v1370 = vmul.f32 %v1337, %v1354
    %v1371 = vmul.f32 %v1338, %v1355
    %v1372 = vmul.f32 %v1339, %v1356
    %v1373 = vmul.f32 %v1340, %v1357
    %v1374 = vmul.f32 %v1341, %v1358
    %v1375 = vmul.f32 %v1342, %v1359
    %v1376 = vmul.f32 %v1343, %v1360
    %v1377 = vmul.f32 %v1344, %v1361
    %v1378 = vmul.f32 %v1345, %v1362
    %v1379 = vmul.f32 %v1346, %v1363
    %v1380 = vmul.f32 %v1347, %v1364
    %v1381 = vpack.c.bf16 %v1366, %v1365
    %v1382 = vpack.c.bf16 %v1368, %v1367
    %v1383 = vpack.c.bf16 %v1370, %v1369
    %v1384 = vpack.c.bf16 %v1372, %v1371
    %v1385 = vpack.c.bf16 %v1374, %v1373
    %v1386 = vpack.c.bf16 %v1376, %v1375
    %v1387 = vpack.c.bf16 %v1378, %v1377
    %v1388 = vpack.c.bf16 %v1380, %v1379
    %1389 = vmatprep.subr.bf16.mxu0 %v871
    %1390 = vmatpush1.bf16.msra.mxu0 %v870
    %1391 = vmatprep.subr.bf16.mxu0 %v873
    %1392 = vmatpush1.bf16.msra.mxu0 %v872
    %1393 = vmatprep.subr.bf16.mxu0 %v875
    %1394 = vmatpush1.bf16.msra.mxu0 %v874
    %1395 = vmatprep.subr.bf16.mxu0 %v877
    %1396 = vmatpush1.bf16.msra.mxu0 %v876
    %1397 = vmatprep.subr.bf16.mxu0 %v879
    %1398 = vmatpush1.bf16.msra.mxu0 %v878
    %1399 = vmatprep.subr.bf16.mxu0 %v881
    %1400 = vmatpush1.bf16.msra.mxu0 %v880
    %1401 = vmatprep.subr.bf16.mxu0 %v883
    %1402 = vmatpush1.bf16.msra.mxu0 %v882
    %1403 = vmatprep.subr.bf16.mxu0 %v885
    %1404 = vmatpush1.bf16.msra.mxu0 %v884
    %1405 = vmatprep.subr.bf16.mxu0 0
    %1406 = vmatpush1.bf16.msra.mxu0 0
    %1407 = vmatprep.subr.bf16.mxu0 0
    %1408 = vmatpush1.bf16.msra.mxu0 0
    %1409 = vmatprep.subr.bf16.mxu0 0
    %1410 = vmatpush1.bf16.msra.mxu0 0
    %1411 = vmatprep.subr.bf16.mxu0 0
    %1412 = vmatpush1.bf16.msra.mxu0 0
    %1413 = vmatprep.subr.bf16.mxu0 0
    %1414 = vmatpush1.bf16.msra.mxu0 0
    %1415 = vmatprep.subr.bf16.mxu0 0
    %1416 = vmatpush1.bf16.msra.mxu0 0
    %1417 = vmatprep.subr.bf16.mxu0 0
    %1418 = vmatpush1.bf16.msra.mxu0 0
    %1419 = vmatprep.subr.bf16.mxu0 0
    %1420 = vmatpush1.bf16.msra.mxu0 0
    %1421 = vmatprep.mubr.bf16.mxu0 0
    %1422 = vmatmul.mubr.bf16.gmra.mrb[0].mxu0 %v1381
    %v1423 = vpop.f32.mrb[0].mxu0
    %v1424 = vadd.f32 0.0, %v1423
    %v1425 = vpop.f32.mrb[0].mxu0
    %v1426 = vadd.f32 0.0, %v1425
    %v1427 = vpop.f32.mrb[0].mxu0
    %v1428 = vadd.f32 0.0, %v1427
    %v1429 = vpop.f32.mrb[0].mxu0
    %v1430 = vadd.f32 0.0, %v1429
    %1431 = vmatprep.mubr.bf16.mxu0 0
    %1432 = vmatmul.mubr.bf16.gmra.mrb[0].mxu0 %v1382
    %v1433 = vpop.f32.mrb[0].mxu0
    %v1434 = vadd.f32 0.0, %v1433
    %v1435 = vpop.f32.mrb[0].mxu0
    %v1436 = vadd.f32 0.0, %v1435
    %v1437 = vpop.f32.mrb[0].mxu0
    %v1438 = vadd.f32 0.0, %v1437
    %v1439 = vpop.f32.mrb[0].mxu0
    %v1440 = vadd.f32 0.0, %v1439
    %1441 = vmatprep.mubr.bf16.mxu0 0
    %1442 = vmatmul.mubr.bf16.gmra.mrb[0].mxu0 %v1383
    %v1443 = vpop.f32.mrb[0].mxu0
    %v1444 = vadd.f32 0.0, %v1443
    %v1445 = vpop.f32.mrb[0].mxu0
    %v1446 = vadd.f32 0.0, %v1445
    %v1447 = vpop.f32.mrb[0].mxu0
    %v1448 = vadd.f32 0.0, %v1447
    %v1449 = vpop.f32.mrb[0].mxu0
    %v1450 = vadd.f32 0.0, %v1449
    %1451 = vmatprep.mubr.bf16.mxu0 0
    %1452 = vmatmul.mubr.bf16.gmra.mrb[0].mxu0 %v1384
    %v1453 = vpop.f32.mrb[0].mxu0
    %v1454 = vadd.f32 0.0, %v1453
    %v1455 = vpop.f32.mrb[0].mxu0
    %v1456 = vadd.f32 0.0, %v1455
    %v1457 = vpop.f32.mrb[0].mxu0
    %v1458 = vadd.f32 0.0, %v1457
    %v1459 = vpop.f32.mrb[0].mxu0
    %v1460 = vadd.f32 0.0, %v1459
    %1461 = vmatprep.mubr.bf16.mxu0 0
    %1462 = vmatmul.mubr.bf16.gmra.mrb[0].mxu0 %v1385
    %v1463 = vpop.f32.mrb[0].mxu0
    %v1464 = vadd.f32 0.0, %v1463
    %v1465 = vpop.f32.mrb[0].mxu0
    %v1466 = vadd.f32 0.0, %v1465
    %v1467 = vpop.f32.mrb[0].mxu0
    %v1468 = vadd.f32 0.0, %v1467
    %v1469 = vpop.f32.mrb[0].mxu0
    %v1470 = vadd.f32 0.0, %v1469
    %1471 = vmatprep.mubr.bf16.mxu0 0
    %1472 = vmatmul.mubr.bf16.gmra.mrb[0].mxu0 %v1386
    %v1473 = vpop.f32.mrb[0].mxu0
    %v1474 = vadd.f32 0.0, %v1473
    %v1475 = vpop.f32.mrb[0].mxu0
    %v1476 = vadd.f32 0.0, %v1475
    %v1477 = vpop.f32.mrb[0].mxu0
    %v1478 = vadd.f32 0.0, %v1477
    %v1479 = vpop.f32.mrb[0].mxu0
    %v1480 = vadd.f32 0.0, %v1479
    %1481 = vmatprep.mubr.bf16.mxu0 0
    %1482 = vmatmul.mubr.bf16.gmra.mrb[0].mxu0 %v1387
    %v1483 = vpop.f32.mrb[0].mxu0
    %v1484 = vadd.f32 0.0, %v1483
    %v1485 = vpop.f32.mrb[0].mxu0
    %v1486 = vadd.f32 0.0, %v1485
    %v1487 = vpop.f32.mrb[0].mxu0
    %v1488 = vadd.f32 0.0, %v1487
    %v1489 = vpop.f32.mrb[0].mxu0
    %v1490 = vadd.f32 0.0, %v1489
    %1491 = vmatprep.mubr.bf16.mxu0 0
    %1492 = vmatmul.mubr.bf16.gmra.mrb[0].mxu0 %v1388
    %v1493 = vpop.f32.mrb[0].mxu0
    %v1494 = vadd.f32 0.0, %v1493
    %v1495 = vpop.f32.mrb[0].mxu0
    %v1496 = vadd.f32 0.0, %v1495
    %v1497 = vpop.f32.mrb[0].mxu0
    %v1498 = vadd.f32 0.0, %v1497
    %v1499 = vpop.f32.mrb[0].mxu0
    %v1500 = vadd.f32 0.0, %v1499
    %1501 = vdwg.mxu0
    %v1502 = vadd.f32 %v1424, %v1019
    %v1503 = vadd.f32 %v1428, %v1019
    %v1504 = vadd.f32 %v1434, %v1019
    %v1505 = vadd.f32 %v1438, %v1019
    %v1506 = vadd.f32 %v1444, %v1019
    %v1507 = vadd.f32 %v1448, %v1019
    %v1508 = vadd.f32 %v1454, %v1019
    %v1509 = vadd.f32 %v1458, %v1019
    %v1510 = vadd.f32 %v1464, %v1019
    %v1511 = vadd.f32 %v1468, %v1019
    %v1512 = vadd.f32 %v1474, %v1019
    %v1513 = vadd.f32 %v1478, %v1019
    %v1514 = vadd.f32 %v1484, %v1019
    %v1515 = vadd.f32 %v1488, %v1019
    %v1516 = vadd.f32 %v1494, %v1019
    %v1517 = vadd.f32 %v1498, %v1019
    %v1518 = vpack.c.bf16 %v1503, %v1502
    %v1519 = vpack.c.bf16 %v1505, %v1504
    %v1520 = vpack.c.bf16 %v1507, %v1506
    %v1521 = vpack.c.bf16 %v1509, %v1508
    %v1522 = vpack.c.bf16 %v1511, %v1510
    %v1523 = vpack.c.bf16 %v1513, %v1512
    %v1524 = vpack.c.bf16 %v1515, %v1514
    %v1525 = vpack.c.bf16 %v1517, %v1516
    %1526 = vmatprep.subr.bf16.mxu0 0
    %1527 = vmatpush1.bf16.msra.mxu0 %v1518
    %1528 = vmatprep.subr.bf16.mxu0 0
    %1529 = vmatpush1.bf16.msra.mxu0 %v1519
    %1530 = vmatprep.subr.bf16.mxu0 0
    %1531 = vmatpush1.bf16.msra.mxu0 %v1520
    %1532 = vmatprep.subr.bf16.mxu0 0
    %1533 = vmatpush1.bf16.msra.mxu0 %v1521
    %1534 = vmatprep.subr.bf16.mxu0 0
    %1535 = vmatpush1.bf16.msra.mxu0 %v1522
    %1536 = vmatprep.subr.bf16.mxu0 0
    %1537 = vmatpush1.bf16.msra.mxu0 %v1523
    %1538 = vmatprep.subr.bf16.mxu0 0
    %1539 = vmatpush1.bf16.msra.mxu0 %v1524
    %1540 = vmatprep.subr.bf16.mxu0 0
    %1541 = vmatpush1.bf16.msra.mxu0 %v1525
    %1542 = vmatprep.subr.bf16.mxu0 0
    %1543 = vmatpush1.bf16.msra.mxu0 0
    %1544 = vmatprep.subr.bf16.mxu0 0
    %1545 = vmatpush1.bf16.msra.mxu0 0
    %1546 = vmatprep.subr.bf16.mxu0 0
    %1547 = vmatpush1.bf16.msra.mxu0 0
    %1548 = vmatprep.subr.bf16.mxu0 0
    %1549 = vmatpush1.bf16.msra.mxu0 0
    %1550 = vmatprep.subr.bf16.mxu0 0
    %1551 = vmatpush1.bf16.msra.mxu0 0
    %1552 = vmatprep.subr.bf16.mxu0 0
    %1553 = vmatpush1.bf16.msra.mxu0 0
    %1554 = vmatprep.subr.bf16.mxu0 0
    %1555 = vmatpush1.bf16.msra.mxu0 0
    %1556 = vmatprep.subr.bf16.mxu0 0
    %1557 = vmatpush1.bf16.msra.mxu0 0
    %1558 = vmatprep.mubr.bf16.mxu0 0
    %1559 = vmatmul.mubr.bf16.gmra.mrb[0].mxu0 %v446
    %v1560 = vpop.f32.mrb[0].mxu0
    %v1561 = vadd.f32 0.0, %v1560
    %v1562 = vpop.f32.mrb[0].mxu0
    %v1563 = vpop.f32.mrb[0].mxu0
    %v1564 = vadd.f32 0.0, %v1563
    %v1565 = vpop.f32.mrb[0].mxu0
    %1566 = vmatprep.mubr.bf16.mxu0 0
    %1567 = vmatmul.mubr.bf16.gmra.mrb[0].mxu0 %v447
    %v1568 = vpop.f32.mrb[0].mxu0
    %v1569 = vadd.f32 0.0, %v1568
    %v1570 = vpop.f32.mrb[0].mxu0
    %v1571 = vpop.f32.mrb[0].mxu0
    %v1572 = vadd.f32 0.0, %v1571
    %v1573 = vpop.f32.mrb[0].mxu0
    %1574 = vmatprep.mubr.bf16.mxu0 0
    %1575 = vmatmul.mubr.bf16.gmra.mrb[0].mxu0 %v448
    %v1576 = vpop.f32.mrb[0].mxu0
    %v1577 = vadd.f32 0.0, %v1576
    %v1578 = vpop.f32.mrb[0].mxu0
    %v1579 = vpop.f32.mrb[0].mxu0
    %v1580 = vadd.f32 0.0, %v1579
    %v1581 = vpop.f32.mrb[0].mxu0
    %1582 = vmatprep.mubr.bf16.mxu0 0
    %1583 = vmatmul.mubr.bf16.gmra.mrb[0].mxu0 %v449
    %v1584 = vpop.f32.mrb[0].mxu0
    %v1585 = vadd.f32 0.0, %v1584
    %v1586 = vpop.f32.mrb[0].mxu0
    %v1587 = vpop.f32.mrb[0].mxu0
    %v1588 = vadd.f32 0.0, %v1587
    %v1589 = vpop.f32.mrb[0].mxu0
    %1590 = vmatprep.mubr.bf16.mxu0 0
    %1591 = vmatmul.mubr.bf16.gmra.mrb[0].mxu0 %v450
    %v1592 = vpop.f32.mrb[0].mxu0
    %v1593 = vadd.f32 0.0, %v1592
    %v1594 = vpop.f32.mrb[0].mxu0
    %v1595 = vpop.f32.mrb[0].mxu0
    %v1596 = vadd.f32 0.0, %v1595
    %v1597 = vpop.f32.mrb[0].mxu0
    %1598 = vmatprep.mubr.bf16.mxu0 0
    %1599 = vmatmul.mubr.bf16.gmra.mrb[0].mxu0 %v451
    %v1600 = vpop.f32.mrb[0].mxu0
    %v1601 = vadd.f32 0.0, %v1600
    %v1602 = vpop.f32.mrb[0].mxu0
    %v1603 = vpop.f32.mrb[0].mxu0
    %v1604 = vadd.f32 0.0, %v1603
    %v1605 = vpop.f32.mrb[0].mxu0
    %1606 = vmatprep.mubr.bf16.mxu0 0
    %1607 = vmatmul.mubr.bf16.gmra.mrb[0].mxu0 %v452
    %v1608 = vpop.f32.mrb[0].mxu0
    %v1609 = vadd.f32 0.0, %v1608
    %v1610 = vpop.f32.mrb[0].mxu0
    %v1611 = vpop.f32.mrb[0].mxu0
    %v1612 = vadd.f32 0.0, %v1611
    %v1613 = vpop.f32.mrb[0].mxu0
    %1614 = vmatprep.mubr.bf16.mxu0 0
    %1615 = vmatmul.mubr.bf16.gmra.mrb[0].mxu0 %v453
    %v1616 = vpop.f32.mrb[0].mxu0
    %v1617 = vadd.f32 0.0, %v1616
    %v1618 = vpop.f32.mrb[0].mxu0
    %v1619 = vpop.f32.mrb[0].mxu0
    %v1620 = vadd.f32 0.0, %v1619
    %v1621 = vpop.f32.mrb[0].mxu0
    %1622 = vdwg.mxu0
    %v1623 = vpack.c.bf16 %v1564, %v1561
    %v1624 = vpack.c.bf16 %v1572, %v1569
    %v1625 = vpack.c.bf16 %v1580, %v1577
    %v1626 = vpack.c.bf16 %v1588, %v1585
    %v1627 = vpack.c.bf16 %v1596, %v1593
    %v1628 = vpack.c.bf16 %v1604, %v1601
    %v1629 = vpack.c.bf16 %v1612, %v1609
    %v1630 = vpack.c.bf16 %v1620, %v1617
    %1631 = vmatprep.subr.bf16.mxu0 0
    %1632 = vmatpush1.bf16.msra.mxu0 %v1198
    %1633 = vmatprep.subr.bf16.mxu0 0
    %1634 = vmatpush1.bf16.msra.mxu0 %v1199
    %1635 = vmatprep.subr.bf16.mxu0 0
    %1636 = vmatpush1.bf16.msra.mxu0 %v1200
    %1637 = vmatprep.subr.bf16.mxu0 0
    %1638 = vmatpush1.bf16.msra.mxu0 %v1201
    %1639 = vmatprep.subr.bf16.mxu0 0
    %1640 = vmatpush1.bf16.msra.mxu0 %v1202
    %1641 = vmatprep.subr.bf16.mxu0 0
    %1642 = vmatpush1.bf16.msra.mxu0 %v1203
    %1643 = vmatprep.subr.bf16.mxu0 0
    %1644 = vmatpush1.bf16.msra.mxu0 %v1204
    %1645 = vmatprep.subr.bf16.mxu0 0
    %1646 = vmatpush1.bf16.msra.mxu0 %v1205
    %1647 = vmatprep.subr.bf16.mxu0 0
    %1648 = vmatpush1.bf16.msra.mxu0 0
    %1649 = vmatprep.subr.bf16.mxu0 0
    %1650 = vmatpush1.bf16.msra.mxu0 0
    %1651 = vmatprep.subr.bf16.mxu0 0
    %1652 = vmatpush1.bf16.msra.mxu0 0
    %1653 = vmatprep.subr.bf16.mxu0 0
    %1654 = vmatpush1.bf16.msra.mxu0 0
    %1655 = vmatprep.subr.bf16.mxu0 0
    %1656 = vmatpush1.bf16.msra.mxu0 0
    %1657 = vmatprep.subr.bf16.mxu0 0
    %1658 = vmatpush1.bf16.msra.mxu0 0
    %1659 = vmatprep.subr.bf16.mxu0 0
    %1660 = vmatpush1.bf16.msra.mxu0 0
    %1661 = vmatprep.subr.bf16.mxu0 0
    %1662 = vmatpush1.bf16.msra.mxu0 0
    %1663 = vmatprep.mubr.bf16.mxu0 0
    %1664 = vmatmul.mubr.bf16.gmra.mrb[0].mxu0 %v1623
    %v1665 = vpop.f32.mrb[0].mxu0
    %v1666 = vadd.f32 %v1426, %v1665
    %v1667 = vpop.f32.mrb[0].mxu0
    %v1668 = vpop.f32.mrb[0].mxu0
    %v1669 = vadd.f32 %v1430, %v1668
    %v1670 = vpop.f32.mrb[0].mxu0
    %1671 = vmatprep.mubr.bf16.mxu0 0
    %1672 = vmatmul.mubr.bf16.gmra.mrb[0].mxu0 %v1624
    %v1673 = vpop.f32.mrb[0].mxu0
    %v1674 = vadd.f32 %v1436, %v1673
    %v1675 = vpop.f32.mrb[0].mxu0
    %v1676 = vpop.f32.mrb[0].mxu0
    %v1677 = vadd.f32 %v1440, %v1676
    %v1678 = vpop.f32.mrb[0].mxu0
    %1679 = vmatprep.mubr.bf16.mxu0 0
    %1680 = vmatmul.mubr.bf16.gmra.mrb[0].mxu0 %v1625
    %v1681 = vpop.f32.mrb[0].mxu0
    %v1682 = vadd.f32 %v1446, %v1681
    %v1683 = vpop.f32.mrb[0].mxu0
    %v1684 = vpop.f32.mrb[0].mxu0
    %v1685 = vadd.f32 %v1450, %v1684
    %v1686 = vpop.f32.mrb[0].mxu0
    %1687 = vmatprep.mubr.bf16.mxu0 0
    %1688 = vmatmul.mubr.bf16.gmra.mrb[0].mxu0 %v1626
    %v1689 = vpop.f32.mrb[0].mxu0
    %v1690 = vadd.f32 %v1456, %v1689
    %v1691 = vpop.f32.mrb[0].mxu0
    %v1692 = vpop.f32.mrb[0].mxu0
    %v1693 = vadd.f32 %v1460, %v1692
    %v1694 = vpop.f32.mrb[0].mxu0
    %1695 = vmatprep.mubr.bf16.mxu0 0
    %1696 = vmatmul.mubr.bf16.gmra.mrb[0].mxu0 %v1627
    %v1697 = vpop.f32.mrb[0].mxu0
    %v1698 = vadd.f32 %v1466, %v1697
    %v1699 = vpop.f32.mrb[0].mxu0
    %v1700 = vpop.f32.mrb[0].mxu0
    %v1701 = vadd.f32 %v1470, %v1700
    %v1702 = vpop.f32.mrb[0].mxu0
    %1703 = vmatprep.mubr.bf16.mxu0 0
    %1704 = vmatmul.mubr.bf16.gmra.mrb[0].mxu0 %v1628
    %v1705 = vpop.f32.mrb[0].mxu0
    %v1706 = vadd.f32 %v1476, %v1705
    %v1707 = vpop.f32.mrb[0].mxu0
    %v1708 = vpop.f32.mrb[0].mxu0
    %v1709 = vadd.f32 %v1480, %v1708
    %v1710 = vpop.f32.mrb[0].mxu0
    %1711 = vmatprep.mubr.bf16.mxu0 0
    %1712 = vmatmul.mubr.bf16.gmra.mrb[0].mxu0 %v1629
    %v1713 = vpop.f32.mrb[0].mxu0
    %v1714 = vadd.f32 %v1486, %v1713
    %v1715 = vpop.f32.mrb[0].mxu0
    %v1716 = vpop.f32.mrb[0].mxu0
    %v1717 = vadd.f32 %v1490, %v1716
    %v1718 = vpop.f32.mrb[0].mxu0
    %1719 = vmatprep.mubr.bf16.mxu0 0
    %1720 = vmatmul.mubr.bf16.gmra.mrb[0].mxu0 %v1630
    %v1721 = vpop.f32.mrb[0].mxu0
    %v1722 = vadd.f32 %v1496, %v1721
    %v1723 = vpop.f32.mrb[0].mxu0
    %v1724 = vpop.f32.mrb[0].mxu0
    %v1725 = vadd.f32 %v1500, %v1724
    %v1726 = vpop.f32.mrb[0].mxu0
    %1727 = vdwg.mxu0
    %v1728 = vadd.f32 %v1666, %v1315
    %v1729 = vadd.f32 %v1669, %v1315
    %v1730 = vadd.f32 %v1674, %v1315
    %v1731 = vadd.f32 %v1677, %v1315
    %v1732 = vadd.f32 %v1682, %v1315
    %v1733 = vadd.f32 %v1685, %v1315
    %v1734 = vadd.f32 %v1690, %v1315
    %v1735 = vadd.f32 %v1693, %v1315
    %v1736 = vadd.f32 %v1698, %v1315
    %v1737 = vadd.f32 %v1701, %v1315
    %v1738 = vadd.f32 %v1706, %v1315
    %v1739 = vadd.f32 %v1709, %v1315
    %v1740 = vadd.f32 %v1714, %v1315
    %v1741 = vadd.f32 %v1717, %v1315
    %v1742 = vadd.f32 %v1722, %v1315
    %v1743 = vadd.f32 %v1725, %v1315
    %v1744 = vmax.f32 %v1728, 0.0
    %v1745 = vmax.f32 %v1729, 0.0
    %v1746 = vmax.f32 %v1730, 0.0
    %v1747 = vmax.f32 %v1731, 0.0
    %v1748 = vmax.f32 %v1732, 0.0
    %v1749 = vmax.f32 %v1733, 0.0
    %v1750 = vmax.f32 %v1734, 0.0
    %v1751 = vmax.f32 %v1735, 0.0
    %v1752 = vmax.f32 %v1736, 0.0
    %v1753 = vmax.f32 %v1737, 0.0
    %v1754 = vmax.f32 %v1738, 0.0
    %v1755 = vmax.f32 %v1739, 0.0
    %v1756 = vmax.f32 %v1740, 0.0
    %v1757 = vmax.f32 %v1741, 0.0
    %v1758 = vmax.f32 %v1742, 0.0
    %v1759 = vmax.f32 %v1743, 0.0
    %s1760 = scalar_lea.vmem [#allocation10], 256
    %v1761 = vld [vmem:[%s1760] sm:$0xff]
    %v1762 = vld [vmem:[%s1760 + $0x8] sm:$0xff]
    %v1763 = vld [vmem:[%s1760 + $0x10] sm:$0xff]
    %v1764 = vld [vmem:[%s1760 + $0x18] sm:$0xff]
    %v1765 = vld [vmem:[%s1760 + $0x20] sm:$0xff]
    %v1766 = vld [vmem:[%s1760 + $0x28] sm:$0xff]
    %v1767 = vld [vmem:[%s1760 + $0x30] sm:$0xff]
    %v1768 = vld [vmem:[%s1760 + $0x38] sm:$0xff]
    %v1769 = vld [vmem:[%s1760 + $0x40] sm:$0xff]
    %v1770 = vld [vmem:[%s1760 + $0x48] sm:$0xff]
    %v1771 = vld [vmem:[%s1760 + $0x50] sm:$0xff]
    %v1772 = vld [vmem:[%s1760 + $0x58] sm:$0xff]
    %v1773 = vld [vmem:[%s1760 + $0x60] sm:$0xff]
    %v1774 = vld [vmem:[%s1760 + $0x68] sm:$0xff]
    %v1775 = vld [vmem:[%s1760 + $0x70] sm:$0xff]
    %v1776 = vld [vmem:[%s1760 + $0x78] sm:$0xff]
    %v1777 = vmul.f32 %v1744, %v1761
    %v1778 = vmul.f32 %v1745, %v1762
    %v1779 = vmul.f32 %v1746, %v1763
    %v1780 = vmul.f32 %v1747, %v1764
    %v1781 = vmul.f32 %v1748, %v1765
    %v1782 = vmul.f32 %v1749, %v1766
    %v1783 = vmul.f32 %v1750, %v1767
    %v1784 = vmul.f32 %v1751, %v1768
    %v1785 = vmul.f32 %v1752, %v1769
    %v1786 = vmul.f32 %v1753, %v1770
    %v1787 = vmul.f32 %v1754, %v1771
    %v1788 = vmul.f32 %v1755, %v1772
    %v1789 = vmul.f32 %v1756, %v1773
    %v1790 = vmul.f32 %v1757, %v1774
    %v1791 = vmul.f32 %v1758, %v1775
    %v1792 = vmul.f32 %v1759, %v1776
    %1793 = vst [vmem:[#allocation11] sm:$0xff] %v1777
    %1794 = vst [vmem:[#allocation11 + $0x8] sm:$0xff] %v1778
    %1795 = vst [vmem:[#allocation11 + $0x10] sm:$0xff] %v1779
    %1796 = vst [vmem:[#allocation11 + $0x18] sm:$0xff] %v1780
    %1797 = vst [vmem:[#allocation11 + $0x20] sm:$0xff] %v1781
    %1798 = vst [vmem:[#allocation11 + $0x28] sm:$0xff] %v1782
    %1799 = vst [vmem:[#allocation11 + $0x30] sm:$0xff] %v1783
    %1800 = vst [vmem:[#allocation11 + $0x38] sm:$0xff] %v1784
    %1801 = vst [vmem:[#allocation11 + $0x40] sm:$0xff] %v1785
    %1802 = vst [vmem:[#allocation11 + $0x48] sm:$0xff] %v1786
    %1803 = vst [vmem:[#allocation11 + $0x50] sm:$0xff] %v1787
    %1804 = vst [vmem:[#allocation11 + $0x58] sm:$0xff] %v1788
    %1805 = vst [vmem:[#allocation11 + $0x60] sm:$0xff] %v1789
    %1806 = vst [vmem:[#allocation11 + $0x68] sm:$0xff] %v1790
    %1807 = vst [vmem:[#allocation11 + $0x70] sm:$0xff] %v1791
    %1808 = vst [vmem:[#allocation11 + $0x78] sm:$0xff] %v1792
    %v1809 = vpack.c.bf16 %v1778, %v1777
    %v1810 = vpack.c.bf16 %v1780, %v1779
    %v1811 = vpack.c.bf16 %v1782, %v1781
    %v1812 = vpack.c.bf16 %v1784, %v1783
    %v1813 = vpack.c.bf16 %v1786, %v1785
    %v1814 = vpack.c.bf16 %v1788, %v1787
    %v1815 = vpack.c.bf16 %v1790, %v1789
    %v1816 = vpack.c.bf16 %v1792, %v1791
    %s1817 = scalar_lea.vmem [#allocation8], 128
    %v1818 = vld [vmem:[%s1817] sm:$0xf]
    %v1819 = vld [vmem:[%s1817 + $0x4] sm:$0xf]
    %v1820 = vld [vmem:[%s1817 + $0x8] sm:$0xf]
    %v1821 = vld [vmem:[%s1817 + $0xc] sm:$0xf]
    %v1822 = vld [vmem:[%s1817 + $0x10] sm:$0xf]
    %v1823 = vld [vmem:[%s1817 + $0x14] sm:$0xf]
    %v1824 = vld [vmem:[%s1817 + $0x18] sm:$0xf]
    %v1825 = vld [vmem:[%s1817 + $0x1c] sm:$0xf]
    %v1826 = vld [vmem:[%s1817 + $0x20] sm:$0xf]
    %v1827 = vld [vmem:[%s1817 + $0x24] sm:$0xf]
    %v1828 = vld [vmem:[%s1817 + $0x28] sm:$0xf]
    %v1829 = vld [vmem:[%s1817 + $0x2c] sm:$0xf]
    %v1830 = vld [vmem:[%s1817 + $0x30] sm:$0xf]
    %v1831 = vld [vmem:[%s1817 + $0x34] sm:$0xf]
    %v1832 = vld [vmem:[%s1817 + $0x38] sm:$0xf]
    %v1833 = vld [vmem:[%s1817 + $0x3c] sm:$0xf]
    %v1834 = vld [vmem:[%s4 + $0x4] sm:$0x1]
    %v1835 = vlaneseq
    %v1836 = vshrl.u32 %v1835, 7
    %v1837 = vsub.s32 0, %v1836
    %v1838 = vrot.slane %v1834, %v1837
    %v1855 = vunpack.c.l.b16 %v1818
    %v1856 = vunpack.c.l.b16 %v1819
    %v1857 = vunpack.c.l.b16 %v1820
    %v1858 = vunpack.c.l.b16 %v1821
    %v1859 = vunpack.c.l.b16 %v1822
    %v1860 = vunpack.c.l.b16 %v1823
    %v1861 = vunpack.c.l.b16 %v1824
    %v1862 = vunpack.c.l.b16 %v1825
    %v1863 = vunpack.c.l.b16 %v1826
    %v1864 = vunpack.c.l.b16 %v1827
    %v1865 = vunpack.c.l.b16 %v1828
    %v1866 = vunpack.c.l.b16 %v1829
    %v1867 = vunpack.c.l.b16 %v1830
    %v1868 = vunpack.c.l.b16 %v1831
    %v1869 = vunpack.c.l.b16 %v1832
    %v1870 = vunpack.c.l.b16 %v1833
    %v1871 = vpack.c.b16 %v1856, %v1855
    %v1872 = vpack.c.b16 %v1858, %v1857
    %v1873 = vpack.c.b16 %v1860, %v1859
    %v1874 = vpack.c.b16 %v1862, %v1861
    %v1875 = vpack.c.b16 %v1864, %v1863
    %v1876 = vpack.c.b16 %v1866, %v1865
    %v1877 = vpack.c.b16 %v1868, %v1867
    %v1878 = vpack.c.b16 %v1870, %v1869
    %1887 = vmatprep.subr.bf16.mxu0 0
    %1888 = vmatpush1.bf16.msra.mxu0 %v1871
    %1889 = vmatprep.subr.bf16.mxu0 0
    %1890 = vmatpush1.bf16.msra.mxu0 %v1872
    %1891 = vmatprep.subr.bf16.mxu0 0
    %1892 = vmatpush1.bf16.msra.mxu0 %v1873
    %1893 = vmatprep.subr.bf16.mxu0 0
    %1894 = vmatpush1.bf16.msra.mxu0 %v1874
    %1895 = vmatprep.subr.bf16.mxu0 0
    %1896 = vmatpush1.bf16.msra.mxu0 %v1875
    %1897 = vmatprep.subr.bf16.mxu0 0
    %1898 = vmatpush1.bf16.msra.mxu0 %v1876
    %1899 = vmatprep.subr.bf16.mxu0 0
    %1900 = vmatpush1.bf16.msra.mxu0 %v1877
    %1901 = vmatprep.subr.bf16.mxu0 0
    %1902 = vmatpush1.bf16.msra.mxu0 %v1878
    %1903 = vmatprep.subr.bf16.mxu0 0
    %1904 = vmatpush1.bf16.msra.mxu0 0
    %1905 = vmatprep.subr.bf16.mxu0 0
    %1906 = vmatpush1.bf16.msra.mxu0 0
    %1907 = vmatprep.subr.bf16.mxu0 0
    %1908 = vmatpush1.bf16.msra.mxu0 0
    %1909 = vmatprep.subr.bf16.mxu0 0
    %1910 = vmatpush1.bf16.msra.mxu0 0
    %1911 = vmatprep.subr.bf16.mxu0 0
    %1912 = vmatpush1.bf16.msra.mxu0 0
    %1913 = vmatprep.subr.bf16.mxu0 0
    %1914 = vmatpush1.bf16.msra.mxu0 0
    %1915 = vmatprep.subr.bf16.mxu0 0
    %1916 = vmatpush1.bf16.msra.mxu0 0
    %1917 = vmatprep.subr.bf16.mxu0 0
    %1918 = vmatpush1.bf16.msra.mxu0 0
    %1919 = vmatprep.mubr.bf16.mxu0 0
    %1920 = vmatmul.mubr.bf16.gmra.mrb[0].mxu0 %v1809
    %v1921 = vpop.f32.mrb[0].mxu0
    %v1922 = vadd.f32 %v1838, %v1921
    %v1923 = vpop.f32.mrb[0].mxu0
    %v1924 = vpop.f32.mrb[0].mxu0
    %v1925 = vadd.f32 %v1838, %v1924
    %v1926 = vpop.f32.mrb[0].mxu0
    %1927 = vmatprep.mubr.bf16.mxu0 0
    %1928 = vmatmul.mubr.bf16.gmra.mrb[0].mxu0 %v1810
    %v1929 = vpop.f32.mrb[0].mxu0
    %v1930 = vadd.f32 %v1838, %v1929
    %v1931 = vpop.f32.mrb[0].mxu0
    %v1932 = vpop.f32.mrb[0].mxu0
    %v1933 = vadd.f32 %v1838, %v1932
    %v1934 = vpop.f32.mrb[0].mxu0
    %1935 = vmatprep.mubr.bf16.mxu0 0
    %1936 = vmatmul.mubr.bf16.gmra.mrb[0].mxu0 %v1811
    %v1937 = vpop.f32.mrb[0].mxu0
    %v1938 = vadd.f32 %v1838, %v1937
    %v1939 = vpop.f32.mrb[0].mxu0
    %v1940 = vpop.f32.mrb[0].mxu0
    %v1941 = vadd.f32 %v1838, %v1940
    %v1942 = vpop.f32.mrb[0].mxu0
    %1943 = vmatprep.mubr.bf16.mxu0 0
    %1944 = vmatmul.mubr.bf16.gmra.mrb[0].mxu0 %v1812
    %v1945 = vpop.f32.mrb[0].mxu0
    %v1946 = vadd.f32 %v1838, %v1945
    %v1947 = vpop.f32.mrb[0].mxu0
    %v1948 = vpop.f32.mrb[0].mxu0
    %v1949 = vadd.f32 %v1838, %v1948
    %v1950 = vpop.f32.mrb[0].mxu0
    %1951 = vmatprep.mubr.bf16.mxu0 0
    %1952 = vmatmul.mubr.bf16.gmra.mrb[0].mxu0 %v1813
    %v1953 = vpop.f32.mrb[0].mxu0
    %v1954 = vadd.f32 %v1838, %v1953
    %v1955 = vpop.f32.mrb[0].mxu0
    %v1956 = vpop.f32.mrb[0].mxu0
    %v1957 = vadd.f32 %v1838, %v1956
    %v1958 = vpop.f32.mrb[0].mxu0
    %1959 = vmatprep.mubr.bf16.mxu0 0
    %1960 = vmatmul.mubr.bf16.gmra.mrb[0].mxu0 %v1814
    %v1961 = vpop.f32.mrb[0].mxu0
    %v1962 = vadd.f32 %v1838, %v1961
    %v1963 = vpop.f32.mrb[0].mxu0
    %v1964 = vpop.f32.mrb[0].mxu0
    %v1965 = vadd.f32 %v1838, %v1964
    %v1966 = vpop.f32.mrb[0].mxu0
    %1967 = vmatprep.mubr.bf16.mxu0 0
    %1968 = vmatmul.mubr.bf16.gmra.mrb[0].mxu0 %v1815
    %v1969 = vpop.f32.mrb[0].mxu0
    %v1970 = vadd.f32 %v1838, %v1969
    %v1971 = vpop.f32.mrb[0].mxu0
    %v1972 = vpop.f32.mrb[0].mxu0
    %v1973 = vadd.f32 %v1838, %v1972
    %v1974 = vpop.f32.mrb[0].mxu0
    %1975 = vmatprep.mubr.bf16.mxu0 0
    %1976 = vmatmul.mubr.bf16.gmra.mrb[0].mxu0 %v1816
    %v1977 = vpop.f32.mrb[0].mxu0
    %v1978 = vadd.f32 %v1838, %v1977
    %v1979 = vpop.f32.mrb[0].mxu0
    %v1980 = vpop.f32.mrb[0].mxu0
    %v1981 = vadd.f32 %v1838, %v1980
    %v1982 = vpop.f32.mrb[0].mxu0
    %1983 = vdwg.mxu0
    %v1984 = vmax.f32 %v1922, 0.0
    %v1985 = vmax.f32 %v1925, 0.0
    %v1986 = vmax.f32 %v1930, 0.0
    %v1987 = vmax.f32 %v1933, 0.0
    %v1988 = vmax.f32 %v1938, 0.0
    %v1989 = vmax.f32 %v1941, 0.0
    %v1990 = vmax.f32 %v1946, 0.0
    %v1991 = vmax.f32 %v1949, 0.0
    %v1992 = vmax.f32 %v1954, 0.0
    %v1993 = vmax.f32 %v1957, 0.0
    %v1994 = vmax.f32 %v1962, 0.0
    %v1995 = vmax.f32 %v1965, 0.0
    %v1996 = vmax.f32 %v1970, 0.0
    %v1997 = vmax.f32 %v1973, 0.0
    %v1998 = vmax.f32 %v1978, 0.0
    %v1999 = vmax.f32 %v1981, 0.0
    %v2000 = vpack.c.bf16 %v1985, %v1984
    %v2001 = vpack.c.bf16 %v1987, %v1986
    %v2002 = vpack.c.bf16 %v1989, %v1988
    %v2003 = vpack.c.bf16 %v1991, %v1990
    %v2004 = vpack.c.bf16 %v1993, %v1992
    %v2005 = vpack.c.bf16 %v1995, %v1994
    %v2006 = vpack.c.bf16 %v1997, %v1996
    %v2007 = vpack.c.bf16 %v1999, %v1998
    %s2008 = scalar_lea.vmem [#allocation8], 192
    %v2009 = vld [vmem:[%s2008] sm:$0xf]
    %v2010 = vld [vmem:[%s2008 + $0x4] sm:$0xf]
    %v2011 = vld [vmem:[%s2008 + $0x8] sm:$0xf]
    %v2012 = vld [vmem:[%s2008 + $0xc] sm:$0xf]
    %v2013 = vld [vmem:[%s2008 + $0x10] sm:$0xf]
    %v2014 = vld [vmem:[%s2008 + $0x14] sm:$0xf]
    %v2015 = vld [vmem:[%s2008 + $0x18] sm:$0xf]
    %v2016 = vld [vmem:[%s2008 + $0x1c] sm:$0xf]
    %v2017 = vld [vmem:[%s2008 + $0x20] sm:$0xf]
    %v2018 = vld [vmem:[%s2008 + $0x24] sm:$0xf]
    %v2019 = vld [vmem:[%s2008 + $0x28] sm:$0xf]
    %v2020 = vld [vmem:[%s2008 + $0x2c] sm:$0xf]
    %v2021 = vld [vmem:[%s2008 + $0x30] sm:$0xf]
    %v2022 = vld [vmem:[%s2008 + $0x34] sm:$0xf]
    %v2023 = vld [vmem:[%s2008 + $0x38] sm:$0xf]
    %v2024 = vld [vmem:[%s2008 + $0x3c] sm:$0xf]
    %v2025 = vld [vmem:[%s4 + $0x5] sm:$0x1]
    %v2026 = vlaneseq
    %v2027 = vshrl.u32 %v2026, 7
    %v2028 = vsub.s32 0, %v2027
    %v2029 = vrot.slane %v2025, %v2028
    %v2046 = vunpack.c.l.b16 %v2009
    %v2047 = vunpack.c.l.b16 %v2010
    %v2048 = vunpack.c.l.b16 %v2011
    %v2049 = vunpack.c.l.b16 %v2012
    %v2050 = vunpack.c.l.b16 %v2013
    %v2051 = vunpack.c.l.b16 %v2014
    %v2052 = vunpack.c.l.b16 %v2015
    %v2053 = vunpack.c.l.b16 %v2016
    %v2054 = vunpack.c.l.b16 %v2017
    %v2055 = vunpack.c.l.b16 %v2018
    %v2056 = vunpack.c.l.b16 %v2019
    %v2057 = vunpack.c.l.b16 %v2020
    %v2058 = vunpack.c.l.b16 %v2021
    %v2059 = vunpack.c.l.b16 %v2022
    %v2060 = vunpack.c.l.b16 %v2023
    %v2061 = vunpack.c.l.b16 %v2024
    %v2062 = vpack.c.b16 %v2047, %v2046
    %v2063 = vpack.c.b16 %v2049, %v2048
    %v2064 = vpack.c.b16 %v2051, %v2050
    %v2065 = vpack.c.b16 %v2053, %v2052
    %v2066 = vpack.c.b16 %v2055, %v2054
    %v2067 = vpack.c.b16 %v2057, %v2056
    %v2068 = vpack.c.b16 %v2059, %v2058
    %v2069 = vpack.c.b16 %v2061, %v2060
    %2078 = vmatprep.subr.bf16.mxu0 0
    %2079 = vmatpush1.bf16.msra.mxu0 %v2062
    %2080 = vmatprep.subr.bf16.mxu0 0
    %2081 = vmatpush1.bf16.msra.mxu0 %v2063
    %2082 = vmatprep.subr.bf16.mxu0 0
    %2083 = vmatpush1.bf16.msra.mxu0 %v2064
    %2084 = vmatprep.subr.bf16.mxu0 0
    %2085 = vmatpush1.bf16.msra.mxu0 %v2065
    %2086 = vmatprep.subr.bf16.mxu0 0
    %2087 = vmatpush1.bf16.msra.mxu0 %v2066
    %2088 = vmatprep.subr.bf16.mxu0 0
    %2089 = vmatpush1.bf16.msra.mxu0 %v2067
    %2090 = vmatprep.subr.bf16.mxu0 0
    %2091 = vmatpush1.bf16.msra.mxu0 %v2068
    %2092 = vmatprep.subr.bf16.mxu0 0
    %2093 = vmatpush1.bf16.msra.mxu0 %v2069
    %2094 = vmatprep.subr.bf16.mxu0 0
    %2095 = vmatpush1.bf16.msra.mxu0 0
    %2096 = vmatprep.subr.bf16.mxu0 0
    %2097 = vmatpush1.bf16.msra.mxu0 0
    %2098 = vmatprep.subr.bf16.mxu0 0
    %2099 = vmatpush1.bf16.msra.mxu0 0
    %2100 = vmatprep.subr.bf16.mxu0 0
    %2101 = vmatpush1.bf16.msra.mxu0 0
    %2102 = vmatprep.subr.bf16.mxu0 0
    %2103 = vmatpush1.bf16.msra.mxu0 0
    %2104 = vmatprep.subr.bf16.mxu0 0
    %2105 = vmatpush1.bf16.msra.mxu0 0
    %2106 = vmatprep.subr.bf16.mxu0 0
    %2107 = vmatpush1.bf16.msra.mxu0 0
    %2108 = vmatprep.subr.bf16.mxu0 0
    %2109 = vmatpush1.bf16.msra.mxu0 0
    %2110 = vmatprep.mubr.bf16.mxu0 0
    %2111 = vmatmul.mubr.bf16.gmra.mrb[0].mxu0 %v2000
    %v2112 = vpop.f32.mrb[0].mxu0
    %v2113 = vadd.f32 %v2029, %v2112
    %v2114 = vpop.f32.mrb[0].mxu0
    %v2115 = vpop.f32.mrb[0].mxu0
    %v2116 = vadd.f32 %v2029, %v2115
    %v2117 = vpop.f32.mrb[0].mxu0
    %2118 = vmatprep.mubr.bf16.mxu0 0
    %2119 = vmatmul.mubr.bf16.gmra.mrb[0].mxu0 %v2001
    %v2120 = vpop.f32.mrb[0].mxu0
    %v2121 = vadd.f32 %v2029, %v2120
    %v2122 = vpop.f32.mrb[0].mxu0
    %v2123 = vpop.f32.mrb[0].mxu0
    %v2124 = vadd.f32 %v2029, %v2123
    %v2125 = vpop.f32.mrb[0].mxu0
    %2126 = vmatprep.mubr.bf16.mxu0 0
    %2127 = vmatmul.mubr.bf16.gmra.mrb[0].mxu0 %v2002
    %v2128 = vpop.f32.mrb[0].mxu0
    %v2129 = vadd.f32 %v2029, %v2128
    %v2130 = vpop.f32.mrb[0].mxu0
    %v2131 = vpop.f32.mrb[0].mxu0
    %v2132 = vadd.f32 %v2029, %v2131
    %v2133 = vpop.f32.mrb[0].mxu0
    %2134 = vmatprep.mubr.bf16.mxu0 0
    %2135 = vmatmul.mubr.bf16.gmra.mrb[0].mxu0 %v2003
    %v2136 = vpop.f32.mrb[0].mxu0
    %v2137 = vadd.f32 %v2029, %v2136
    %v2138 = vpop.f32.mrb[0].mxu0
    %v2139 = vpop.f32.mrb[0].mxu0
    %v2140 = vadd.f32 %v2029, %v2139
    %v2141 = vpop.f32.mrb[0].mxu0
    %2142 = vmatprep.mubr.bf16.mxu0 0
    %2143 = vmatmul.mubr.bf16.gmra.mrb[0].mxu0 %v2004
    %v2144 = vpop.f32.mrb[0].mxu0
    %v2145 = vadd.f32 %v2029, %v2144
    %v2146 = vpop.f32.mrb[0].mxu0
    %v2147 = vpop.f32.mrb[0].mxu0
    %v2148 = vadd.f32 %v2029, %v2147
    %v2149 = vpop.f32.mrb[0].mxu0
    %2150 = vmatprep.mubr.bf16.mxu0 0
    %2151 = vmatmul.mubr.bf16.gmra.mrb[0].mxu0 %v2005
    %v2152 = vpop.f32.mrb[0].mxu0
    %v2153 = vadd.f32 %v2029, %v2152
    %v2154 = vpop.f32.mrb[0].mxu0
    %v2155 = vpop.f32.mrb[0].mxu0
    %v2156 = vadd.f32 %v2029, %v2155
    %v2157 = vpop.f32.mrb[0].mxu0
    %2158 = vmatprep.mubr.bf16.mxu0 0
    %2159 = vmatmul.mubr.bf16.gmra.mrb[0].mxu0 %v2006
    %v2160 = vpop.f32.mrb[0].mxu0
    %v2161 = vadd.f32 %v2029, %v2160
    %v2162 = vpop.f32.mrb[0].mxu0
    %v2163 = vpop.f32.mrb[0].mxu0
    %v2164 = vadd.f32 %v2029, %v2163
    %v2165 = vpop.f32.mrb[0].mxu0
    %2166 = vmatprep.mubr.bf16.mxu0 0
    %2167 = vmatmul.mubr.bf16.gmra.mrb[0].mxu0 %v2007
    %v2168 = vpop.f32.mrb[0].mxu0
    %v2169 = vadd.f32 %v2029, %v2168
    %v2170 = vpop.f32.mrb[0].mxu0
    %v2171 = vpop.f32.mrb[0].mxu0
    %v2172 = vadd.f32 %v2029, %v2171
    %v2173 = vpop.f32.mrb[0].mxu0
    %2174 = vdwg.mxu0
    %2175 = vst [vmem:[#allocation12] sm:$0xff] %v2113
    %2176 = vst [vmem:[#allocation12 + $0x8] sm:$0xff] %v2116
    %2177 = vst [vmem:[#allocation12 + $0x10] sm:$0xff] %v2121
    %2178 = vst [vmem:[#allocation12 + $0x18] sm:$0xff] %v2124
    %2179 = vst [vmem:[#allocation12 + $0x20] sm:$0xff] %v2129
    %2180 = vst [vmem:[#allocation12 + $0x28] sm:$0xff] %v2132
    %2181 = vst [vmem:[#allocation12 + $0x30] sm:$0xff] %v2137
    %2182 = vst [vmem:[#allocation12 + $0x38] sm:$0xff] %v2140
    %2183 = vst [vmem:[#allocation12 + $0x40] sm:$0xff] %v2145
    %2184 = vst [vmem:[#allocation12 + $0x48] sm:$0xff] %v2148
    %2185 = vst [vmem:[#allocation12 + $0x50] sm:$0xff] %v2153
    %2186 = vst [vmem:[#allocation12 + $0x58] sm:$0xff] %v2156
    %2187 = vst [vmem:[#allocation12 + $0x60] sm:$0xff] %v2161
    %2188 = vst [vmem:[#allocation12 + $0x68] sm:$0xff] %v2164
    %2189 = vst [vmem:[#allocation12 + $0x70] sm:$0xff] %v2169
    %2190 = vst [vmem:[#allocation12 + $0x78] sm:$0xff] %v2172
    // Predicated region
    $region46: #{tpu_custom_call.1} parent=1 // pred_check
      _
    $region47: #{tpu_custom_call.1} parent=1 // pred_check_branch
      %2192 = sbr.rel (0) target = $region49
    $region48: #{tpu_custom_call.1} parent=1 // pred_region
      %s2194 = ssub.s32 2048, 2048
      %2195 = vsyncadd [#allocation4], %s2194
      %s2196 = sshll.u32 [#allocation11], 4
      %s2197 = int_to_ptr.vmem [resolvable:$true] %s2196
      %2202 = dma.vmem_to_hbm [thread:$0]  %s2197, 2048, %s6, [#allocation4], 128, 128, 8
    $region49: #{tpu_custom_call.1} parent=1 // pred_fallthru
      _
    // Predicated region
    $region50: #{tpu_custom_call.1} parent=1 // pred_check
      _
    $region51: #{tpu_custom_call.1} parent=1 // pred_check_branch
      %2204 = sbr.rel (0) target = $region53
    $region52: #{tpu_custom_call.1} parent=1 // pred_region
      %s2206 = ssub.s32 2048, 2048
      %2207 = vsyncadd [#allocation13], %s2206
      %s2208 = sshll.u32 [#allocation12], 4
      %s2209 = int_to_ptr.vmem [resolvable:$true] %s2208
      %2214 = dma.vmem_to_hbm [thread:$0]  %s2209, 2048, %s7, [#allocation13], 128, 128, 8
    $region53: #{tpu_custom_call.1} parent=1 // pred_fallthru
      _
    // Predicated region
    $region54: #{tpu_custom_call.1} parent=1 // pred_check
      _
    $region55: #{tpu_custom_call.1} parent=1 // pred_check_branch
      %2216 = sbr.rel (0) target = $region57
    $region56: #{tpu_custom_call.1} parent=1 // pred_region
      %2217 = dma.done [#allocation4], 2048
    $region57: #{tpu_custom_call.1} parent=1 // pred_fallthru
      _
    // Predicated region
    $region58: #{tpu_custom_call.1} parent=1 // pred_check
      _
    $region59: #{tpu_custom_call.1} parent=1 // pred_check_branch
      %2219 = sbr.rel (0) target = $region61
    $region60: #{tpu_custom_call.1} parent=1 // pred_region
      %2220 = dma.done [#allocation13], 2048
    $region61: #{tpu_custom_call.1} parent=1 // pred_fallthru
      _
    %2221 = vsyncpa [#allocation3], 1
    %2222 = vsyncpa [#allocation6], 1
    %2223 = vsyncpa [#allocation9], 1
    %2224 = vsyncpa [#allocation4], 1
    %2225 = vsyncpa [#allocation13], 1

</llo_original>
